<compile_context>
chip_gen: v5e
topology: v5e:2x2
jax: 0.10.0
libtpu: 0.0.40
codegen_flags: <defaults>
</compile_context>

<pallas_src>
import functools

import jax
import jax.numpy as jnp
import numpy as np
from jax.experimental import pallas as pl
from jax.experimental.pallas import tpu as pltpu

LEAKY_SLOPE = 0.2
BN_EPS = 1e-5
# Scoped-VMEM budget: stays below v7x's 64 MiB physical VMEM while giving
# v5e/v6e (128 MiB physical) more headroom than the 32 MiB default.
VMEM_LIMIT = 48 * 1024 * 1024
TH_CAP = 32  # output rows per grid step (th * Wc >= ~1-4k GEMM rows at real sizes)


def _round_up(x, m):
    return (x + m - 1) // m * m


def _cdiv(a, b):
    return (a + b - 1) // b


# ---------------------------------------------------------------------------
# Pallas kernels
# ---------------------------------------------------------------------------
def _conv_act_kernel(xm_ref, xh_ref, w_ref, scale_ref, shift_ref, o_ref,
                     acc_ref, slab_ref, *, ke, th, hr, Wc, act):
    """Direct stride-1 (ke x ke) conv over one (th, Wc) output tile with a fused
    per-channel affine + activation epilogue.  bf16 operands, f32 accumulator."""
    # Assemble the input slab (tile rows + halo rows) once per grid step.
    slab_ref[0:th] = xm_ref[0]
    slab_ref[th:th + hr] = xh_ref[0]
    acc_ref[...] = jnp.zeros_like(acc_ref)
    ce = slab_ref.shape[-1]
    for di in range(ke):
        for dj in range(ke):
            a = slab_ref[di:di + th, dj:dj + Wc, :]        # (th, Wc, Ce) bf16
            a2 = a.reshape(th * Wc, ce)                    # layout-trivial (Wc % 8 == 0)
            acc_ref[...] += jnp.dot(a2, w_ref[di, dj],
                                    preferred_element_type=jnp.float32)
    y = acc_ref[...] * scale_ref[0] + shift_ref[0]
    if act == "leaky":
        y = jnp.where(y >= 0.0, y, LEAKY_SLOPE * y)
    elif act == "sigmoid":
        # approx reciprocal runs on the EUP slot; error << test tolerance.
        y = pl.reciprocal(1.0 + jnp.exp(-y), approx=True)
    o_ref[0] = y.reshape(th, Wc, -1).astype(o_ref.dtype)


def _conv_stats_kernel(xm_ref, xh_ref, w_ref, o_ref, sum_ref, sq_ref,
                       acc_ref, slab_ref, *, ke, th, hr, Wc, Ho, Wo):
    """Same direct conv, but emits the raw (bf16) activation plus per-tile partial
    per-channel sum / sum-of-squares (f32) for training-mode BatchNorm."""
    slab_ref[0:th] = xm_ref[0]
    slab_ref[th:th + hr] = xh_ref[0]
    acc_ref[...] = jnp.zeros_like(acc_ref)
    ce = slab_ref.shape[-1]
    for di in range(ke):
        for dj in range(ke):
            a = slab_ref[di:di + th, dj:dj + Wc, :]
            a2 = a.reshape(th * Wc, ce)
            acc_ref[...] += jnp.dot(a2, w_ref[di, dj],
                                    preferred_element_type=jnp.float32)
    y3 = acc_ref[...].reshape(th, Wc, -1)
    o_ref[0] = y3.astype(o_ref.dtype)
    # Partial statistics, masked to valid (non-padding) output pixels.
    if (Ho % th != 0) or (Wo != Wc):
        r = pl.program_id(1)
        rows = jax.lax.broadcasted_iota(jnp.int32, (th, Wc, 1), 0)
        cols = jax.lax.broadcasted_iota(jnp.int32, (th, Wc, 1), 1)
        valid = (rows + r * th < Ho) & (cols < Wo)
        ym = jnp.where(valid, y3, 0.0)
    else:
        ym = y3
    sum_ref[...] = jnp.sum(ym, axis=(0, 1)).reshape(1, 1, 1, -1)
    sq_ref[...] = jnp.sum(ym * ym, axis=(0, 1)).reshape(1, 1, 1, -1)


def _affine_leaky_kernel(y_ref, scale_ref, shift_ref, o_ref):
    """out = LeakyReLU_0.2(y * scale + shift), per-channel scale/shift."""
    y = y_ref[0].astype(jnp.float32) * scale_ref[0] + shift_ref[0]
    o_ref[0] = jnp.where(y >= 0.0, y, LEAKY_SLOPE * y).astype(o_ref.dtype)


# ---------------------------------------------------------------------------
# Per-layer wrapper
# ---------------------------------------------------------------------------
def conv_layer(x, layer):
    """x: (N, H, W, Cin) activations; returns (N, Ho, Wo, Cout)."""
    w = layer["w"]                       # (Cout, Cin, 4, 4) f32
    stride = layer["stride"]
    Cout, Cin, kh, kw = w.shape
    N, H, W, _ = x.shape

    xp = jnp.pad(x.astype(jnp.bfloat16), ((0, 0), (1, 1), (1, 1), (0, 0)))
    w_hwio = jnp.transpose(w, (2, 3, 1, 0))               # (kh, kw, Cin, Cout)

    if stride == 2:
        # Space-to-depth: a stride-2 4x4 conv == stride-1 2x2 conv over 4*Cin chans.
        assert H % 2 == 0 and W % 2 == 0, "stride-2 layers require even H, W"
        Hp, Wp = H + 2, W + 2
        xs = xp.reshape(N, Hp // 2, 2, Wp // 2, 2, Cin)
        xs = xs.transpose(0, 1, 3, 2, 4, 5).reshape(N, Hp // 2, Wp // 2, 4 * Cin)
        we = w_hwio.reshape(2, 2, 2, 2, Cin, Cout)
        we = we.transpose(0, 2, 1, 3, 4, 5).reshape(2, 2, 4 * Cin, Cout)
        ke = 2
    else:
        xs, we, ke = xp, w_hwio, 4
    # TODO(synk): the space-to-depth repack is still one XLA copy of the activation;
    # it could be folded into the kernel with per-phase input specs if needed.

    Ce = xs.shape[-1]
    Hs, Ws = xs.shape[1], xs.shape[2]
    Ho, Wo = Hs - ke + 1, Ws - ke + 1

    th = min(TH_CAP, _round_up(Ho, 8))       # output rows per grid step
    n_r = _cdiv(Ho, th)
    Wc = _round_up(Wo, 8)                    # compute width (keeps reshapes layout-trivial)
    hr = 2 if ke == 2 else 4                 # halo rows (divides th, >= ke-1)
    Cop = _round_up(Cout, 8)                 # padded channel-out (only affects the 1-ch head)

    Hs_pad = n_r * th + hr
    Ws_pad = Wc + ke - 1
    xs = jnp.pad(xs, ((0, 0), (0, Hs_pad - Hs), (0, Ws_pad - Ws), (0, 0)))
    we = jnp.pad(we.astype(jnp.bfloat16), ((0, 0), (0, 0), (0, 0), (0, Cop - Cout)))

    grid = (N, n_r)
    hal_blk = th // hr
    xm_spec = pl.BlockSpec((1, th, Ws_pad, Ce), lambda n, r: (n, r, 0, 0))
    xh_spec = pl.BlockSpec((1, hr, Ws_pad, Ce), lambda n, r: (n, (r + 1) * hal_blk, 0, 0))
    w_spec = pl.BlockSpec((ke, ke, Ce, Cop), lambda n, r: (0, 0, 0, 0))  # resident weights
    vec_spec = pl.BlockSpec((1, Cop), lambda n, r: (0, 0))
    out_spec = pl.BlockSpec((1, th, Wc, Cop), lambda n, r: (n, r, 0, 0))
    stat_spec = pl.BlockSpec((1, 1, 1, Cop), lambda n, r: (n, r, 0, 0))

    scratch = [pltpu.VMEM((th * Wc, Cop), jnp.float32),            # f32 accumulator
               pltpu.VMEM((th + hr, Ws_pad, Ce), jnp.bfloat16)]    # input slab (tile+halo)

    cparams = pltpu.CompilerParams(
        dimension_semantics=("parallel", "parallel"),
        vmem_limit_bytes=VMEM_LIMIT)

    if layer["bn"] is None:
        bias = layer["b"] if layer["b"] is not None else jnp.zeros((Cout,), jnp.float32)
        scale = jnp.zeros((1, Cop), jnp.float32).at[0, :Cout].set(1.0)
        shift = jnp.zeros((1, Cop), jnp.float32).at[0, :Cout].set(bias.astype(jnp.float32))
        out_dtype = jnp.float32 if layer["act"] == "sigmoid" else jnp.bfloat16
        y = pl.pallas_call(
            functools.partial(_conv_act_kernel, ke=ke, th=th, hr=hr, Wc=Wc, act=layer["act"]),
            out_shape=jax.ShapeDtypeStruct((N, n_r * th, Wc, Cop), out_dtype),
            grid_spec=pltpu.PrefetchScalarGridSpec(
                num_scalar_prefetch=0, grid=grid,
                in_specs=[xm_spec, xh_spec, w_spec, vec_spec, vec_spec],
                out_specs=out_spec,
                scratch_shapes=scratch),
            compiler_params=cparams,
        )(xs, xs, we, scale, shift)
    else:
        gamma, beta = layer["bn"]
        y_raw, s_p, sq_p = pl.pallas_call(
            functools.partial(_conv_stats_kernel, ke=ke, th=th, hr=hr, Wc=Wc, Ho=Ho, Wo=Wo),
            out_shape=(jax.ShapeDtypeStruct((N, n_r * th, Wc, Cop), jnp.bfloat16),
                       jax.ShapeDtypeStruct((N, n_r, 1, Cop), jnp.float32),
                       jax.ShapeDtypeStruct((N, n_r, 1, Cop), jnp.float32)),
            grid_spec=pltpu.PrefetchScalarGridSpec(
                num_scalar_prefetch=0, grid=grid,
                in_specs=[xm_spec, xh_spec, w_spec],
                out_specs=(out_spec, stat_spec, stat_spec),
                scratch_shapes=scratch),
            compiler_params=cparams,
        )(xs, xs, we)
        # BatchNorm2d training mode: biased batch statistics over (N, H, W).
        cnt = float(N * Ho * Wo)
        s = jnp.sum(s_p, axis=(0, 1, 2))[:Cout]
        sq = jnp.sum(sq_p, axis=(0, 1, 2))[:Cout]
        mean = s / cnt
        # TODO(synk): E[y^2]-mean^2 in f32 can cancel for large-mean channels; use a
        # second masked pass over y if tighter accuracy is ever required.
        var = jnp.maximum(sq / cnt - mean * mean, 0.0)
        inv = jax.lax.rsqrt(var + BN_EPS)
        scale_vec = gamma * inv
        shift_vec = beta - mean * scale_vec
        scale = jnp.zeros((1, Cop), jnp.float32).at[0, :Cout].set(scale_vec)
        shift = jnp.zeros((1, Cop), jnp.float32).at[0, :Cout].set(shift_vec)
        y = pl.pallas_call(
            _affine_leaky_kernel,
            out_shape=jax.ShapeDtypeStruct((N, n_r * th, Wc, Cop), jnp.bfloat16),
            grid_spec=pltpu.PrefetchScalarGridSpec(
                num_scalar_prefetch=0, grid=grid,
                in_specs=[out_spec, vec_spec, vec_spec],
                out_specs=out_spec),
            compiler_params=cparams,
        )(y_raw, scale, shift)

    return y[:, :Ho, :Wo, :Cout]


# ---------------------------------------------------------------------------
# Discriminator construction / forward
# ---------------------------------------------------------------------------
def make_discriminator(key, input_nc, ndf=64, n_layers=3):
    kw = 4
    keys = iter(jax.random.split(key, 8 * (n_layers + 2)))

    def uni(shape, bound):
        return jax.random.uniform(next(keys), shape, jnp.float32, -bound, bound)

    def conv_w(cout, cin):
        bound = 1.0 / np.sqrt(cin * kw * kw)
        return uni((cout, cin, kw, kw), bound)

    def bn_params(c):
        gamma = 1.0 + 0.1 * uni((c,), 1.0)
        beta = 0.1 * uni((c,), 1.0)
        return (gamma, beta)

    layers = []
    # Conv(input_nc -> ndf, s=2, bias) + LeakyReLU
    layers.append(dict(w=conv_w(ndf, input_nc),
                       b=uni((ndf,), 1.0 / np.sqrt(input_nc * kw * kw)),
                       bn=None, stride=2, act="leaky"))
    nf_mult, nf_mult_prev = 1, 1
    for n in range(1, n_layers):
        nf_mult_prev, nf_mult = nf_mult, min(2 ** n, 8)
        cout, cin = ndf * nf_mult, ndf * nf_mult_prev
        layers.append(dict(w=conv_w(cout, cin), b=None, bn=bn_params(cout),
                           stride=2, act="leaky"))
    nf_mult_prev, nf_mult = nf_mult, min(2 ** n_layers, 8)
    cout, cin = ndf * nf_mult, ndf * nf_mult_prev
    layers.append(dict(w=conv_w(cout, cin), b=None, bn=bn_params(cout),
                       stride=1, act="leaky"))
    # Conv(-> 1, s=1, bias) + Sigmoid
    layers.append(dict(w=conv_w(1, cout),
                       b=uni((1,), 1.0 / np.sqrt(cout * kw * kw)),
                       bn=None, stride=1, act="sigmoid"))
    return layers


def discriminator_forward(layers, x_nchw):
    x = jnp.transpose(x_nchw, (0, 2, 3, 1)).astype(jnp.bfloat16)  # NCHW -> NHWC, bf16
    for layer in layers:
        x = conv_layer(x, layer)
    return jnp.transpose(x, (0, 3, 1, 2)).astype(jnp.float32)     # NHWC -> NCHW


# Pure-JAX reference for the correctness check.
def reference_forward(layers, x_nchw):
    x = x_nchw
    for layer in layers:
        y = jax.lax.conv_general_dilated(
            x, layer["w"], (layer["stride"],) * 2, [(1, 1), (1, 1)],
            dimension_numbers=("NCHW", "OIHW", "NCHW"),
            precision=jax.lax.Precision.HIGHEST)
        if layer["b"] is not None:
            y = y + layer["b"][None, :, None, None]
        if layer["bn"] is not None:
            gamma, beta = layer["bn"]
            mean = jnp.mean(y, axis=(0, 2, 3), keepdims=True)
            var = jnp.mean((y - mean) ** 2, axis=(0, 2, 3), keepdims=True)
            y = gamma[None, :, None, None] * (y - mean) / jnp.sqrt(var + BN_EPS) \
                + beta[None, :, None, None]
        if layer["act"] == "leaky":
            y = jnp.where(y >= 0.0, y, LEAKY_SLOPE * y)
        else:
            y = jax.nn.sigmoid(y)
        x = y
    return x


if __name__ == "__main__":
    key = jax.random.PRNGKey(0)
    k_param, k_x = jax.random.split(key)

    input_nc, ndf, n_layers = 3, 16, 3                       # small, module-consistent
    x = jax.random.normal(k_x, (2, input_nc, 32, 32), jnp.float32)   # NCHW like torch

    layers = make_discriminator(k_param, input_nc, ndf=ndf, n_layers=n_layers)

    out = jax.block_until_ready(discriminator_forward(layers, x))
    ref = jax.block_until_ready(reference_forward(layers, x))
    assert out.shape == ref.shape, (out.shape, ref.shape)
    assert np.allclose(np.asarray(out), np.asarray(ref), atol=5e-2, rtol=5e-2)

    print("KERNEL_OK")
</pallas_src>

<mosaic_0001>
module attributes {stable_mosaic.version = 11 : i64} {
  func.func @_conv_act_kernel(%arg0: i32, %arg1: i32, %arg2: memref<1x16x17x12xbf16, #tpu.memory_space<vmem>>, %arg3: memref<1x2x17x12xbf16, #tpu.memory_space<vmem>>, %arg4: memref<2x2x12x16xbf16, #tpu.memory_space<vmem>>, %arg5: memref<1x16xf32, #tpu.memory_space<vmem>>, %arg6: memref<1x16xf32, #tpu.memory_space<vmem>>, %arg7: memref<1x16x16x16xbf16, #tpu.memory_space<vmem>>, %arg8: memref<256x16xf32, #tpu.memory_space<vmem>>, %arg9: memref<18x17x12xbf16, #tpu.memory_space<vmem>>) attributes {dimension_semantics = [#tpu.dimension_semantics<parallel>, #tpu.dimension_semantics<parallel>], iteration_bounds = array<i64: 2, 1>, scalar_prefetch = 0 : i64, scratch_operands = 2 : i64, tpu.core_type = #tpu.core_type<tc>, window_params = [{transform_indices = @transform_0, window_bounds = array<i64: 1, 16, 17, 12>}, {transform_indices = @transform_1, window_bounds = array<i64: 1, 2, 17, 12>}, {pipeline_mode = #tpu.pipeline_mode<synchronous>, transform_indices = @transform_2, window_bounds = array<i64: 2, 2, 12, 16>}, {pipeline_mode = #tpu.pipeline_mode<synchronous>, transform_indices = @transform_3, window_bounds = array<i64: 1, 16>}, {pipeline_mode = #tpu.pipeline_mode<synchronous>, transform_indices = @transform_4, window_bounds = array<i64: 1, 16>}, {transform_indices = @transform_5, window_bounds = array<i64: 1, 16, 16, 16>}]} {
    %c0 = arith.constant 0 : index
    %c0_0 = arith.constant 0 : index
    %c0_1 = arith.constant 0 : index
    %c0_2 = arith.constant 0 : index
    %0 = vector.load %arg2[%c0, %c0_0, %c0_1, %c0_2] : memref<1x16x17x12xbf16, #tpu.memory_space<vmem>>, vector<1x16x17x12xbf16>
    %1 = vector.shape_cast %0 : vector<1x16x17x12xbf16> to vector<16x17x12xbf16>
    %c0_3 = arith.constant 0 : index
    %c0_4 = arith.constant 0 : index
    %c0_5 = arith.constant 0 : index
    %2 = vector.load %arg9[%c0_3, %c0_4, %c0_5] : memref<18x17x12xbf16, #tpu.memory_space<vmem>>, vector<16x17x12xbf16>
    tpu.vector_store %arg9[%c0_3, %c0_4, %c0_5], %1 {strides = array<i32>} : memref<18x17x12xbf16, #tpu.memory_space<vmem>>, vector<16x17x12xbf16>,
    %c0_6 = arith.constant 0 : index
    %c0_7 = arith.constant 0 : index
    %c0_8 = arith.constant 0 : index
    %c0_9 = arith.constant 0 : index
    %3 = vector.load %arg3[%c0_6, %c0_7, %c0_8, %c0_9] : memref<1x2x17x12xbf16, #tpu.memory_space<vmem>>, vector<1x2x17x12xbf16>
    %4 = vector.shape_cast %3 : vector<1x2x17x12xbf16> to vector<2x17x12xbf16>
    %c16 = arith.constant 16 : index
    %c0_10 = arith.constant 0 : index
    %c0_11 = arith.constant 0 : index
    %5 = vector.load %arg9[%c16, %c0_10, %c0_11] : memref<18x17x12xbf16, #tpu.memory_space<vmem>>, vector<2x17x12xbf16>
    tpu.vector_store %arg9[%c16, %c0_10, %c0_11], %4 {strides = array<i32>} : memref<18x17x12xbf16, #tpu.memory_space<vmem>>, vector<2x17x12xbf16>,
    %cst = arith.constant 0.000000e+00 : f32
    %6 = vector.broadcast %cst : f32 to vector<256x16xf32>
    %c0_12 = arith.constant 0 : index
    %c0_13 = arith.constant 0 : index
    %7 = vector.load %arg8[%c0_12, %c0_13] : memref<256x16xf32, #tpu.memory_space<vmem>>, vector<256x16xf32>
    tpu.vector_store %arg8[%c0_12, %c0_13], %6 {strides = array<i32>} : memref<256x16xf32, #tpu.memory_space<vmem>>, vector<256x16xf32>,
    %c0_14 = arith.constant 0 : index
    %c0_15 = arith.constant 0 : index
    %c0_16 = arith.constant 0 : index
    %8 = vector.load %arg9[%c0_14, %c0_15, %c0_16] : memref<18x17x12xbf16, #tpu.memory_space<vmem>>, vector<16x16x12xbf16>
    %9 = vector.shape_cast %8 : vector<16x16x12xbf16> to vector<256x12xbf16>
    %c0_17 = arith.constant 0 : index
    %c0_18 = arith.constant 0 : index
    %10 = vector.load %arg8[%c0_17, %c0_18] : memref<256x16xf32, #tpu.memory_space<vmem>>, vector<256x16xf32>
    %c0_19 = arith.constant 0 : index
    %c0_20 = arith.constant 0 : index
    %c0_21 = arith.constant 0 : index
    %c0_22 = arith.constant 0 : index
    %11 = vector.load %arg4[%c0_19, %c0_20, %c0_21, %c0_22] : memref<2x2x12x16xbf16, #tpu.memory_space<vmem>>, vector<1x1x12x16xbf16>
    %12 = vector.shape_cast %11 : vector<1x1x12x16xbf16> to vector<12x16xbf16>
    %cst_23 = arith.constant dense<0.000000e+00> : vector<256x16xf32>
    %13 = tpu.matmul %9, %12, %cst_23 {dimension_numbers = #tpu.dot_dimension_numbers<[1], [0], [0], [1], [0, 0, 1, 1], [], []>} : vector<256x12xbf16>, vector<12x16xbf16>, vector<256x16xf32> -> vector<256x16xf32>
    %14 = arith.addf %10, %13 : vector<256x16xf32>
    %c0_24 = arith.constant 0 : index
    %c0_25 = arith.constant 0 : index
    %15 = vector.load %arg8[%c0_24, %c0_25] : memref<256x16xf32, #tpu.memory_space<vmem>>, vector<256x16xf32>
    tpu.vector_store %arg8[%c0_24, %c0_25], %14 {strides = array<i32>} : memref<256x16xf32, #tpu.memory_space<vmem>>, vector<256x16xf32>,
    %c0_26 = arith.constant 0 : index
    %c1 = arith.constant 1 : index
    %c0_27 = arith.constant 0 : index
    %16 = vector.load %arg9[%c0_26, %c1, %c0_27] : memref<18x17x12xbf16, #tpu.memory_space<vmem>>, vector<16x16x12xbf16>
    %17 = vector.shape_cast %16 : vector<16x16x12xbf16> to vector<256x12xbf16>
    %c0_28 = arith.constant 0 : index
    %c0_29 = arith.constant 0 : index
    %18 = vector.load %arg8[%c0_28, %c0_29] : memref<256x16xf32, #tpu.memory_space<vmem>>, vector<256x16xf32>
    %c0_30 = arith.constant 0 : index
    %c1_31 = arith.constant 1 : index
    %c0_32 = arith.constant 0 : index
    %c0_33 = arith.constant 0 : index
    %19 = vector.load %arg4[%c0_30, %c1_31, %c0_32, %c0_33] : memref<2x2x12x16xbf16, #tpu.memory_space<vmem>>, vector<1x1x12x16xbf16>
    %20 = vector.shape_cast %19 : vector<1x1x12x16xbf16> to vector<12x16xbf16>
    %cst_34 = arith.constant dense<0.000000e+00> : vector<256x16xf32>
    %21 = tpu.matmul %17, %20, %cst_34 {dimension_numbers = #tpu.dot_dimension_numbers<[1], [0], [0], [1], [0, 0, 1, 1], [], []>} : vector<256x12xbf16>, vector<12x16xbf16>, vector<256x16xf32> -> vector<256x16xf32>
    %22 = arith.addf %18, %21 : vector<256x16xf32>
    %c0_35 = arith.constant 0 : index
    %c0_36 = arith.constant 0 : index
    %23 = vector.load %arg8[%c0_35, %c0_36] : memref<256x16xf32, #tpu.memory_space<vmem>>, vector<256x16xf32>
    tpu.vector_store %arg8[%c0_35, %c0_36], %22 {strides = array<i32>} : memref<256x16xf32, #tpu.memory_space<vmem>>, vector<256x16xf32>,
    %c1_37 = arith.constant 1 : index
    %c0_38 = arith.constant 0 : index
    %c0_39 = arith.constant 0 : index
    %24 = vector.load %arg9[%c1_37, %c0_38, %c0_39] : memref<18x17x12xbf16, #tpu.memory_space<vmem>>, vector<16x16x12xbf16>
    %25 = vector.shape_cast %24 : vector<16x16x12xbf16> to vector<256x12xbf16>
    %c0_40 = arith.constant 0 : index
    %c0_41 = arith.constant 0 : index
    %26 = vector.load %arg8[%c0_40, %c0_41] : memref<256x16xf32, #tpu.memory_space<vmem>>, vector<256x16xf32>
    %c1_42 = arith.constant 1 : index
    %c0_43 = arith.constant 0 : index
    %c0_44 = arith.constant 0 : index
    %c0_45 = arith.constant 0 : index
    %27 = vector.load %arg4[%c1_42, %c0_43, %c0_44, %c0_45] : memref<2x2x12x16xbf16, #tpu.memory_space<vmem>>, vector<1x1x12x16xbf16>
    %28 = vector.shape_cast %27 : vector<1x1x12x16xbf16> to vector<12x16xbf16>
    %cst_46 = arith.constant dense<0.000000e+00> : vector<256x16xf32>
    %29 = tpu.matmul %25, %28, %cst_46 {dimension_numbers = #tpu.dot_dimension_numbers<[1], [0], [0], [1], [0, 0, 1, 1], [], []>} : vector<256x12xbf16>, vector<12x16xbf16>, vector<256x16xf32> -> vector<256x16xf32>
    %30 = arith.addf %26, %29 : vector<256x16xf32>
    %c0_47 = arith.constant 0 : index
    %c0_48 = arith.constant 0 : index
    %31 = vector.load %arg8[%c0_47, %c0_48] : memref<256x16xf32, #tpu.memory_space<vmem>>, vector<256x16xf32>
    tpu.vector_store %arg8[%c0_47, %c0_48], %30 {strides = array<i32>} : memref<256x16xf32, #tpu.memory_space<vmem>>, vector<256x16xf32>,
    %c1_49 = arith.constant 1 : index
    %c1_50 = arith.constant 1 : index
    %c0_51 = arith.constant 0 : index
    %32 = vector.load %arg9[%c1_49, %c1_50, %c0_51] : memref<18x17x12xbf16, #tpu.memory_space<vmem>>, vector<16x16x12xbf16>
    %33 = vector.shape_cast %32 : vector<16x16x12xbf16> to vector<256x12xbf16>
    %c0_52 = arith.constant 0 : index
    %c0_53 = arith.constant 0 : index
    %34 = vector.load %arg8[%c0_52, %c0_53] : memref<256x16xf32, #tpu.memory_space<vmem>>, vector<256x16xf32>
    %c1_54 = arith.constant 1 : index
    %c1_55 = arith.constant 1 : index
    %c0_56 = arith.constant 0 : index
    %c0_57 = arith.constant 0 : index
    %35 = vector.load %arg4[%c1_54, %c1_55, %c0_56, %c0_57] : memref<2x2x12x16xbf16, #tpu.memory_space<vmem>>, vector<1x1x12x16xbf16>
    %36 = vector.shape_cast %35 : vector<1x1x12x16xbf16> to vector<12x16xbf16>
    %cst_58 = arith.constant dense<0.000000e+00> : vector<256x16xf32>
    %37 = tpu.matmul %33, %36, %cst_58 {dimension_numbers = #tpu.dot_dimension_numbers<[1], [0], [0], [1], [0, 0, 1, 1], [], []>} : vector<256x12xbf16>, vector<12x16xbf16>, vector<256x16xf32> -> vector<256x16xf32>
    %38 = arith.addf %34, %37 : vector<256x16xf32>
    %c0_59 = arith.constant 0 : index
    %c0_60 = arith.constant 0 : index
    %39 = vector.load %arg8[%c0_59, %c0_60] : memref<256x16xf32, #tpu.memory_space<vmem>>, vector<256x16xf32>
    tpu.vector_store %arg8[%c0_59, %c0_60], %38 {strides = array<i32>} : memref<256x16xf32, #tpu.memory_space<vmem>>, vector<256x16xf32>,
    %c0_61 = arith.constant 0 : index
    %c0_62 = arith.constant 0 : index
    %40 = vector.load %arg8[%c0_61, %c0_62] : memref<256x16xf32, #tpu.memory_space<vmem>>, vector<256x16xf32>
    %c0_63 = arith.constant 0 : index
    %c0_64 = arith.constant 0 : index
    %41 = vector.load %arg5[%c0_63, %c0_64] : memref<1x16xf32, #tpu.memory_space<vmem>>, vector<1x16xf32>
    %42 = vector.shape_cast %41 : vector<1x16xf32> to vector<16xf32>
    %43 = vector.shape_cast %42 : vector<16xf32> to vector<1x16xf32>
    %44 = vector.broadcast %43 : vector<1x16xf32> to vector<256x16xf32>
    %45 = arith.mulf %40, %44 : vector<256x16xf32>
    %c0_65 = arith.constant 0 : index
    %c0_66 = arith.constant 0 : index
    %46 = vector.load %arg6[%c0_65, %c0_66] : memref<1x16xf32, #tpu.memory_space<vmem>>, vector<1x16xf32>
    %47 = vector.shape_cast %46 : vector<1x16xf32> to vector<16xf32>
    %48 = vector.shape_cast %47 : vector<16xf32> to vector<1x16xf32>
    %49 = vector.broadcast %48 : vector<1x16xf32> to vector<256x16xf32>
    %50 = arith.addf %45, %49 : vector<256x16xf32>
    %cst_67 = arith.constant 0.000000e+00 : f32
    %51 = vector.broadcast %cst_67 : f32 to vector<256x16xf32>
    %52 = arith.cmpf oge, %50, %51 : vector<256x16xf32>
    %cst_68 = arith.constant 2.000000e-01 : f32
    %53 = vector.broadcast %cst_68 : f32 to vector<256x16xf32>
    %54 = arith.mulf %53, %50 : vector<256x16xf32>
    %55 = arith.select %52, %50, %54 : vector<256x16xi1>, vector<256x16xf32>
    %56 = vector.shape_cast %55 : vector<256x16xf32> to vector<16x16x16xf32>
    %57 = arith.truncf %56 : vector<16x16x16xf32> to vector<16x16x16xbf16>
    %c0_69 = arith.constant 0 : index
    %c0_70 = arith.constant 0 : index
    %c0_71 = arith.constant 0 : index
    %c0_72 = arith.constant 0 : index
    %58 = vector.load %arg7[%c0_69, %c0_70, %c0_71, %c0_72] : memref<1x16x16x16xbf16, #tpu.memory_space<vmem>>, vector<1x16x16x16xbf16>
    %59 = vector.shape_cast %58 : vector<1x16x16x16xbf16> to vector<16x16x16xbf16>
    %60 = vector.shape_cast %57 : vector<16x16x16xbf16> to vector<1x16x16x16xbf16>
    tpu.vector_store %arg7[%c0_69, %c0_70, %c0_71, %c0_72], %60 {strides = array<i32>} : memref<1x16x16x16xbf16, #tpu.memory_space<vmem>>, vector<1x16x16x16xbf16>,
    return
  }
  func.func @transform_0(%arg0: i32, %arg1: i32) -> (i32, i32, i32, i32) {
    %c0_i32 = arith.constant 0 : i32
    %c0_i32_0 = arith.constant 0 : i32
    %c0_i32_1 = arith.constant 0 : i32
    return %arg0, %arg1, %c0_i32, %c0_i32_0 : i32, i32, i32, i32
  }
  func.func @transform_1(%arg0: i32, %arg1: i32) -> (i32, i32, i32, i32) {
    %c1_i32 = arith.constant 1 : i32
    %0 = arith.addi %arg1, %c1_i32 : i32
    %c8_i32 = arith.constant 8 : i32
    %1 = arith.muli %0, %c8_i32 : i32
    %c0_i32 = arith.constant 0 : i32
    %c0_i32_0 = arith.constant 0 : i32
    %c0_i32_1 = arith.constant 0 : i32
    return %arg0, %1, %c0_i32, %c0_i32_0 : i32, i32, i32, i32
  }
  func.func @transform_2(%arg0: i32, %arg1: i32) -> (i32, i32, i32, i32) {
    %c0_i32 = arith.constant 0 : i32
    %c0_i32_0 = arith.constant 0 : i32
    %c0_i32_1 = arith.constant 0 : i32
    %c0_i32_2 = arith.constant 0 : i32
    %c0_i32_3 = arith.constant 0 : i32
    return %c0_i32, %c0_i32_0, %c0_i32_1, %c0_i32_2 : i32, i32, i32, i32
  }
  func.func @transform_3(%arg0: i32, %arg1: i32) -> (i32, i32) {
    %c0_i32 = arith.constant 0 : i32
    %c0_i32_0 = arith.constant 0 : i32
    %c0_i32_1 = arith.constant 0 : i32
    return %c0_i32, %c0_i32_0 : i32, i32
  }
  func.func @transform_4(%arg0: i32, %arg1: i32) -> (i32, i32) {
    %c0_i32 = arith.constant 0 : i32
    %c0_i32_0 = arith.constant 0 : i32
    %c0_i32_1 = arith.constant 0 : i32
    return %c0_i32, %c0_i32_0 : i32, i32
  }
  func.func @transform_5(%arg0: i32, %arg1: i32) -> (i32, i32, i32, i32) {
    %c0_i32 = arith.constant 0 : i32
    %c0_i32_0 = arith.constant 0 : i32
    %c0_i32_1 = arith.constant 0 : i32
    return %arg0, %arg1, %c0_i32, %c0_i32_0 : i32, i32, i32, i32
  }
}

</mosaic_0001>

<llo_original>
// kernel: tpu_custom_call.1
$region0: #{tpu_custom_call.1}
  #allocation0 [shape = 'u32[]', space=smem, size = 0x4, offset = 0x4, fixed_abs, tag = 'smem constant byte address 0x4 - core index']
  #allocation1 [shape = 'u32[72,128]{1,0:T(1,128)}', space=vmem, size = 0x9000, scoped, tag = 'internal scratch']
  #allocation2 [shape = 'f32[256,16]{1,0:T(8,128)}', space=vmem, size = 0x20000, scoped, tag = 'scratch operand']
  #allocation3 [shape = 'bf16[18,17,12]{2,1,0:T(8,128)(2,1)}', space=vmem, size = 0x1b000, scoped, tag = 'scratch operand']
  %s0 = inlined_call_operand.vmem [shape: bf16[2,18,17,12], index: 0, kind: input, shape index: {}]
  %s1 = inlined_call_operand.vmem [shape: bf16[2,18,17,12], index: 1, kind: input, shape index: {}]
  %s2 = inlined_call_operand.vmem [shape: bf16[2,2,12,16], index: 2, kind: input, shape index: {}]
  %s3 = inlined_call_operand.vmem [shape: f32[1,16], index: 3, kind: input, shape index: {}]
  %s4 = inlined_call_operand.vmem [shape: f32[1,16], index: 4, kind: input, shape index: {}]
  %s5 = inlined_call_operand.hbm [shape: bf16[2,16,16,16], index: 5, kind: output, shape index: {}]
  %s6 = sld [smem:[#allocation0]]
  $region53: #{tpu_custom_call.1} parent=0
    _
  %s8 = ssub.s32 1, %s6
  %s9 = scalar_select 0, %s8, %s6
  $region1: #{tpu_custom_call.1} parent=0
    #allocation4 [shape = 'u8[131072]{0}', space=vmem, size = 0x20000, scoped, tag = 'output window, operand 0']
    #allocation5 [shape = 's32[2]{0}', space=sflag, size = 0x8, scoped, tag = 'scoped memory for tpu_custom_call.1']
    %10 = vsyncpa [#allocation5], 0
    %s11 = scalar_lea.sflag [#allocation5], 1
    %12 = vsyncpa %s11, 0
    loop: start=0, step=1, limit=4
    $region2: #{tpu_custom_call.1} parent=1 // loop_pre_header
      _
    $region3: #{tpu_custom_call.1} parent=1 // loop_header
      %s14 = sphi 0, %s18
      %p15 = scmp.ge.s32.totalorder %s14, 4
      %s21 = sphi 0, %s33
      %s22 = sphi 0, %s29
      %s23 = sphi 0, %s21
      %s24 = sphi 0, %s22
      %s25 = sphi 0, %s23
      %s26 = sphi 0, %s24
      %s38 = sphi 0, %s40
      %s41 = sphi 0, %s38
      %s42 = sphi 0, %s41
      %s58 = sphi 0, %s42
      %s70 = sphi 0, %s72
      %s73 = sphi 0, %s70
      %s74 = sphi 0, %s73
      %s90 = sphi 0, %s74
      %s94 = sphi 0, %s94
      %s96 = sphi 0, %s94
      %s97 = sphi 0, %s96
      %s111 = sphi 0, %s97
      %s115 = sphi 0, %s115
      %s117 = sphi 0, %s115
      %s118 = sphi 0, %s117
      %s132 = sphi 0, %s118
      %s136 = sphi 0, %s136
      %s138 = sphi 0, %s136
      %s139 = sphi 0, %s138
      %s153 = sphi 0, %s139
      %s161 = sphi 0, %s163
      %s164 = sphi 0, %s161
      %s165 = sphi 0, %s164
      %s181 = sphi 0, %s165
    $region4: #{tpu_custom_call.1} parent=1 // loop_header_branch
      %17 = sbr.rel (%p15) target = $region8
    $region5: #{tpu_custom_call.1} parent=1 // loop_body
      %s19 = ssub.s32 %s14, 1
      %s20 = ssub.s32 %s14, 2
      %s27 = sadd.s32 1, %s22
      %p28 = scmp.ge.s32.totalorder %s27, 1
      %s29 = scalar_select %p28, 0, %s27
      %s30 = sadd.s32 1, %s21
      %s31 = scalar_select %p28, %s30, %s21
      %p32 = scmp.ge.s32.totalorder %s31, 2
      %s33 = scalar_select %p32, 0, %s31
      %s34 = ssub.s32 %s21, %s33
      %s35 = ssub.s32 %s22, %s29
      %s36 = sor.u32 %s34, %s35
      %p37 = scmp.eq.s32.totalorder %s36, 0
      %s39 = sadd.s32 %s38, 1
      %s40 = scalar_select %p37, %s38, %s39
      %p43 = pneg %p37
      %p44 = scmp.eq.s32.totalorder %s14, 1
      %p45 = por %p43, %p44
      %p46 = scmp.ne.s32.totalorder %s38, %s41
      %p47 = scmp.eq.s32.totalorder %s14, 0
      %p48 = por %p46, %p47
      %p49 = scmp.ne.s32.totalorder %s38, %s41
      %p50 = scmp.eq.s32.totalorder %s19, 1
      %p51 = por %p49, %p50
      %p52 = scmp.ne.s32.totalorder %s41, %s42
      %p53 = scmp.eq.s32.totalorder %s19, 0
      %p54 = por %p52, %p53
      %p55 = scmp.ne.s32.totalorder %s41, %s42
      %p56 = scmp.eq.s32.totalorder %s20, 1
      %p57 = por %p55, %p56
      %p59 = scmp.ne.s32.totalorder %s42, %s58
      %p60 = scmp.eq.s32.totalorder %s20, 0
      %p61 = por %p59, %p60
      %s62 = sadd.s32 %s22, 1
      %s63 = smul.u32 %s62, 8
      %s64 = sadd.s32 %s29, 1
      %s65 = smul.u32 %s64, 8
      %s66 = ssub.s32 %s21, %s33
      %s67 = ssub.s32 %s63, %s65
      %s68 = sor.u32 %s66, %s67
      %p69 = scmp.eq.s32.totalorder %s68, 0
      %s71 = sadd.s32 %s70, 1
      %s72 = scalar_select %p69, %s70, %s71
      %p75 = pneg %p69
      %p76 = scmp.eq.s32.totalorder %s14, 1
      %p77 = por %p75, %p76
      %p78 = scmp.ne.s32.totalorder %s70, %s73
      %p79 = scmp.eq.s32.totalorder %s14, 0
      %p80 = por %p78, %p79
      %p81 = scmp.ne.s32.totalorder %s70, %s73
      %p82 = scmp.eq.s32.totalorder %s19, 1
      %p83 = por %p81, %p82
      %p84 = scmp.ne.s32.totalorder %s73, %s74
      %p85 = scmp.eq.s32.totalorder %s19, 0
      %p86 = por %p84, %p85
      %p87 = scmp.ne.s32.totalorder %s73, %s74
      %p88 = scmp.eq.s32.totalorder %s20, 1
      %p89 = por %p87, %p88
      %p91 = scmp.ne.s32.totalorder %s74, %s90
      %p92 = scmp.eq.s32.totalorder %s20, 0
      %p93 = por %p91, %p92
      %s95 = sadd.s32 %s94, 1
      %p98 = scmp.eq.s32.totalorder %s14, 1
      %p99 = scmp.ne.s32.totalorder %s94, %s96
      %p100 = scmp.eq.s32.totalorder %s14, 0
      %p101 = por %p99, %p100
      %p102 = scmp.ne.s32.totalorder %s94, %s96
      %p103 = scmp.eq.s32.totalorder %s19, 1
      %p104 = por %p102, %p103
      %p105 = scmp.ne.s32.totalorder %s96, %s97
      %p106 = scmp.eq.s32.totalorder %s19, 0
      %p107 = por %p105, %p106
      %p108 = scmp.ne.s32.totalorder %s96, %s97
      %p109 = scmp.eq.s32.totalorder %s20, 1
      %p110 = por %p108, %p109
      %p112 = scmp.ne.s32.totalorder %s97, %s111
      %p113 = scmp.eq.s32.totalorder %s20, 0
      %p114 = por %p112, %p113
      %s116 = sadd.s32 %s115, 1
      %p119 = scmp.eq.s32.totalorder %s14, 1
      %p120 = scmp.ne.s32.totalorder %s115, %s117
      %p121 = scmp.eq.s32.totalorder %s14, 0
      %p122 = por %p120, %p121
      %p123 = scmp.ne.s32.totalorder %s115, %s117
      %p124 = scmp.eq.s32.totalorder %s19, 1
      %p125 = por %p123, %p124
      %p126 = scmp.ne.s32.totalorder %s117, %s118
      %p127 = scmp.eq.s32.totalorder %s19, 0
      %p128 = por %p126, %p127
      %p129 = scmp.ne.s32.totalorder %s117, %s118
      %p130 = scmp.eq.s32.totalorder %s20, 1
      %p131 = por %p129, %p130
      %p133 = scmp.ne.s32.totalorder %s118, %s132
      %p134 = scmp.eq.s32.totalorder %s20, 0
      %p135 = por %p133, %p134
      %s137 = sadd.s32 %s136, 1
      %p140 = scmp.eq.s32.totalorder %s14, 1
      %p141 = scmp.ne.s32.totalorder %s136, %s138
      %p142 = scmp.eq.s32.totalorder %s14, 0
      %p143 = por %p141, %p142
      %p144 = scmp.ne.s32.totalorder %s136, %s138
      %p145 = scmp.eq.s32.totalorder %s19, 1
      %p146 = por %p144, %p145
      %p147 = scmp.ne.s32.totalorder %s138, %s139
      %p148 = scmp.eq.s32.totalorder %s19, 0
      %p149 = por %p147, %p148
      %p150 = scmp.ne.s32.totalorder %s138, %s139
      %p151 = scmp.eq.s32.totalorder %s20, 1
      %p152 = por %p150, %p151
      %p154 = scmp.ne.s32.totalorder %s139, %s153
      %p155 = scmp.eq.s32.totalorder %s20, 0
      %p156 = por %p154, %p155
      %s157 = ssub.s32 %s21, %s33
      %s158 = ssub.s32 %s22, %s29
      %s159 = sor.u32 %s157, %s158
      %p160 = scmp.eq.s32.totalorder %s159, 0
      %s162 = sadd.s32 %s161, 1
      %s163 = scalar_select %p160, %s161, %s162
      %p166 = pneg %p160
      %p167 = scmp.eq.s32.totalorder %s14, 1
      %p168 = por %p166, %p167
      %p169 = scmp.ne.s32.totalorder %s161, %s164
      %p170 = scmp.eq.s32.totalorder %s14, 0
      %p171 = por %p169, %p170
      %p172 = scmp.ne.s32.totalorder %s161, %s164
      %p173 = scmp.eq.s32.totalorder %s19, 1
      %p174 = por %p172, %p173
      %p175 = scmp.ne.s32.totalorder %s164, %s165
      %p176 = scmp.eq.s32.totalorder %s19, 0
      %p177 = por %p175, %p176
      %p178 = scmp.ne.s32.totalorder %s164, %s165
      %p179 = scmp.eq.s32.totalorder %s20, 1
      %p180 = por %p178, %p179
      %p182 = scmp.ne.s32.totalorder %s165, %s181
      %p183 = scmp.eq.s32.totalorder %s20, 0
      %p184 = por %p182, %p183
      %p185 = scmp.le.s32.totalorder 1, %s14
      %p186 = scmp.lt.s32.totalorder %s14, 3
      %p187 = pnand %p185, %p186
      %p188 = pneg %p187
      // Predicated region
      $region9: #{tpu_custom_call.1} parent=5 // pred_check
        _
      $region10: #{tpu_custom_call.1} parent=5 // pred_check_branch
        %190 = sbr.rel (%p187) target = $region12
      $region11: #{tpu_custom_call.1} parent=5 // pred_region
        %s191 = ssub.s32 %s14, 1
        // Predicated region
        $region13: #{tpu_custom_call.1} parent=11 // pred_check
          %p192 = pneg %p107
        $region14: #{tpu_custom_call.1} parent=11 // pred_check_branch
          %194 = sbr.rel (%p192) target = $region16
        $region15: #{tpu_custom_call.1} parent=11 // pred_region
          _
        $region16: #{tpu_custom_call.1} parent=11 // pred_fallthru
          _
        // Predicated region
        $region17: #{tpu_custom_call.1} parent=11 // pred_check
          %p195 = pneg %p128
        $region18: #{tpu_custom_call.1} parent=11 // pred_check_branch
          %197 = sbr.rel (%p195) target = $region20
        $region19: #{tpu_custom_call.1} parent=11 // pred_region
          _
        $region20: #{tpu_custom_call.1} parent=11 // pred_fallthru
          _
        // Predicated region
        $region21: #{tpu_custom_call.1} parent=11 // pred_check
          %p198 = pneg %p149
        $region22: #{tpu_custom_call.1} parent=11 // pred_check_branch
          %200 = sbr.rel (%p198) target = $region24
        $region23: #{tpu_custom_call.1} parent=11 // pred_region
          _
        $region24: #{tpu_custom_call.1} parent=11 // pred_fallthru
          _
      $region12: #{tpu_custom_call.1} parent=5 // pred_fallthru
        _
      %p201 = scmp.lt.s32.totalorder %s14, 2
      // Predicated region
      $region25: #{tpu_custom_call.1} parent=5 // pred_check
        %p202 = pneg %p201
      $region26: #{tpu_custom_call.1} parent=5 // pred_check_branch
        %204 = sbr.rel (%p202) target = $region28
      $region27: #{tpu_custom_call.1} parent=5 // pred_region
        // Predicated region
        $region29: #{tpu_custom_call.1} parent=27 // pred_check
          %p205 = pneg %p48
        $region30: #{tpu_custom_call.1} parent=27 // pred_check_branch
          %207 = sbr.rel (%p205) target = $region32
        $region31: #{tpu_custom_call.1} parent=27 // pred_region
          %s208 = smul.u32 16, %s22
          %s209 = ssub.s32 18, %s208
          %p210 = scmp.lt.s32.totalorder %s209, 16
          %s211 = scalar_select %p210, %s209, 16
          %s212 = smul.u32 4, %s211
          %s213 = smul.u32 %s212, 3
          %p214 = scmp.lt.s32.totalorder %s21, 1
          %s215 = scalar_select %p214, %s21, 1
          %p216 = scmp.lt.s32.totalorder %s208, 17
          %s217 = scalar_select %p216, %s208, 17
          %s218 = smul.addr %s217, 3
          %s219 = smul.addr %s215, 54
          %s220 = sadd.s32 %s218, %s219
          %s221 = smul.addr %s220, 4
          %s222 = scalar_lea.vmem %s0, %s221
          %s223 = smul.u32 16, %s22
          %s224 = ssub.s32 18, %s223
          %p225 = scmp.lt.s32.totalorder %s224, 16
          %s226 = scalar_select %p225, %s224, 16
          %s227 = smul.u32 4, %s226
          %s228 = smul.u32 %s227, 3
        $region32: #{tpu_custom_call.1} parent=27 // pred_fallthru
          _
        // Predicated region
        $region33: #{tpu_custom_call.1} parent=27 // pred_check
          %p229 = pneg %p80
        $region34: #{tpu_custom_call.1} parent=27 // pred_check_branch
          %231 = sbr.rel (%p229) target = $region36
        $region35: #{tpu_custom_call.1} parent=27 // pred_region
          %s232 = sadd.s32 %s22, 1
          %s233 = smul.u32 %s232, 8
          %s234 = smul.u32 2, %s233
          %p235 = scmp.lt.s32.totalorder %s21, 1
          %s236 = scalar_select %p235, %s21, 1
          %p237 = scmp.lt.s32.totalorder %s234, 17
          %s238 = scalar_select %p237, %s234, 17
          %s239 = smul.addr %s238, 3
          %s240 = smul.addr %s236, 54
          %s241 = sadd.s32 %s239, %s240
          %s242 = smul.addr %s241, 4
          %s243 = scalar_lea.vmem %s1, %s242
          %s244 = sadd.s32 %s22, 1
          %s245 = smul.u32 %s244, 8
          %s246 = smul.u32 2, %s245
        $region36: #{tpu_custom_call.1} parent=27 // pred_fallthru
          _
      $region28: #{tpu_custom_call.1} parent=5 // pred_fallthru
        _
      %p247 = scmp.le.s32.totalorder 1, %s14
      %p248 = scmp.lt.s32.totalorder %s14, 3
      %p249 = pnand %p247, %p248
      %p250 = pneg %p249
      // Predicated region
      $region37: #{tpu_custom_call.1} parent=5 // pred_check
        _
      $region38: #{tpu_custom_call.1} parent=5 // pred_check_branch
        %252 = sbr.rel (%p249) target = $region40
      $region39: #{tpu_custom_call.1} parent=5 // pred_region
        %s253 = ssub.s32 %s14, 1
        %s254 = smul.u32 16, %s24
        %s255 = ssub.s32 18, %s254
        %p256 = scmp.lt.s32.totalorder %s255, 16
        %s257 = scalar_select %p256, %s255, 16
        %s258 = smul.u32 4, %s257
        %s259 = smul.u32 %s258, 3
        %p260 = scmp.lt.s32.totalorder %s23, 1
        %s261 = scalar_select %p260, %s23, 1
        %p262 = scmp.lt.s32.totalorder %s254, 17
        %s263 = scalar_select %p262, %s254, 17
        %s264 = smul.addr %s263, 3
        %s265 = smul.addr %s261, 54
        %s266 = sadd.s32 %s264, %s265
        %s267 = smul.addr %s266, 4
        %s268 = scalar_lea.vmem %s0, %s267
        %p269 = pneg %p54
        %p270 = pneg %p51
        %s271 = sadd.s32 %s24, 1
        %s272 = smul.u32 %s271, 8
        %s273 = smul.u32 2, %s272
        %p274 = scmp.lt.s32.totalorder %s23, 1
        %s275 = scalar_select %p274, %s23, 1
        %p276 = scmp.lt.s32.totalorder %s273, 17
        %s277 = scalar_select %p276, %s273, 17
        %s278 = smul.addr %s277, 3
        %s279 = smul.addr %s275, 54
        %s280 = sadd.s32 %s278, %s279
        %s281 = smul.addr %s280, 4
        %s282 = scalar_lea.vmem %s1, %s281
        %p283 = pneg %p86
        %p284 = pneg %p83
        %p285 = pneg %p107
        %p286 = pneg %p104
        %p287 = pneg %p128
        %p288 = pneg %p125
        %p289 = pneg %p149
        %p290 = pneg %p146
        %p291 = pneg %p177
        %p292 = pneg %p174
        %s293 = sand.u32 %s164, 1
        %s294 = scalar_lea.sflag [#allocation5], %s293
        %s295 = sand.u32 %s164, 1
        %s296 = smul.addr %s295, 128
        %s297 = scalar_lea.vmem [#allocation4], %s296
        %s298 = smul.u32 16, %s24
        %s299 = ssub.s32 18, %s298
        %p300 = scmp.lt.s32.totalorder %s299, 16
        %s301 = scalar_select %p300, %s299, 16
        %s302 = smul.u32 4, %s301
        %s303 = smul.u32 %s302, 3
        %p304 = scmp.lt.s32.totalorder %s23, 1
        %s305 = scalar_select %p304, %s23, 1
        %p306 = scmp.lt.s32.totalorder %s298, 17
        %s307 = scalar_select %p306, %s298, 17
        %s308 = smul.addr %s307, 3
        %s309 = smul.addr %s305, 54
        %s310 = sadd.s32 %s308, %s309
        %s311 = smul.addr %s310, 4
        %s312 = scalar_lea.vmem %s0, %s311
        %s313 = smul.u32 16, %s24
        %s314 = ssub.s32 18, %s313
        %p315 = scmp.lt.s32.totalorder %s314, 16
        %s316 = scalar_select %p315, %s314, 16
        %s317 = smul.u32 4, %s316
        %s318 = smul.u32 %s317, 3
        %s319 = sadd.s32 %s24, 1
        %s320 = smul.u32 %s319, 8
        %s321 = smul.u32 2, %s320
        %p322 = scmp.lt.s32.totalorder %s23, 1
        %s323 = scalar_select %p322, %s23, 1
        %p324 = scmp.lt.s32.totalorder %s321, 17
        %s325 = scalar_select %p324, %s321, 17
        %s326 = smul.addr %s325, 3
        %s327 = smul.addr %s323, 54
        %s328 = sadd.s32 %s326, %s327
        %s329 = smul.addr %s328, 4
        %s330 = scalar_lea.vmem %s1, %s329
        %s331 = sadd.s32 %s24, 1
        %s332 = smul.u32 %s331, 8
        %s333 = smul.u32 2, %s332
        %s334 = smul.u32 16, %s24
        %v336 = vld [vmem:[%s312] sm:$0xf]
        %v337 = vld [vmem:[%s312 + $0x4] sm:$0xf]
        %v338 = vld [vmem:[%s312 + $0x8] sm:$0x1]
        %v339 = vld [vmem:[%s312 + $0xc] sm:$0xf]
        %v340 = vld [vmem:[%s312 + $0x10] sm:$0xf]
        %v341 = vld [vmem:[%s312 + $0x14] sm:$0x1]
        %v342 = vld [vmem:[%s312 + $0x18] sm:$0xf]
        %v343 = vld [vmem:[%s312 + $0x1c] sm:$0xf]
        %v344 = vld [vmem:[%s312 + $0x20] sm:$0x1]
        %v345 = vld [vmem:[%s312 + $0x24] sm:$0xf]
        %v346 = vld [vmem:[%s312 + $0x28] sm:$0xf]
        %v347 = vld [vmem:[%s312 + $0x2c] sm:$0x1]
        %v348 = vld [vmem:[%s312 + $0x30] sm:$0xf]
        %v349 = vld [vmem:[%s312 + $0x34] sm:$0xf]
        %v350 = vld [vmem:[%s312 + $0x38] sm:$0x1]
        %v351 = vld [vmem:[%s312 + $0x3c] sm:$0xf]
        %v352 = vld [vmem:[%s312 + $0x40] sm:$0xf]
        %v353 = vld [vmem:[%s312 + $0x44] sm:$0x1]
        %v354 = vld [vmem:[%s312 + $0x48] sm:$0xf]
        %v355 = vld [vmem:[%s312 + $0x4c] sm:$0xf]
        %v356 = vld [vmem:[%s312 + $0x50] sm:$0x1]
        %v357 = vld [vmem:[%s312 + $0x54] sm:$0xf]
        %v358 = vld [vmem:[%s312 + $0x58] sm:$0xf]
        %v359 = vld [vmem:[%s312 + $0x5c] sm:$0x1]
        %v360 = vld [vmem:[%s312 + $0x60] sm:$0xf]
        %v361 = vld [vmem:[%s312 + $0x64] sm:$0xf]
        %v362 = vld [vmem:[%s312 + $0x68] sm:$0x1]
        %v363 = vld [vmem:[%s312 + $0x6c] sm:$0xf]
        %v364 = vld [vmem:[%s312 + $0x70] sm:$0xf]
        %v365 = vld [vmem:[%s312 + $0x74] sm:$0x1]
        %v366 = vld [vmem:[%s312 + $0x78] sm:$0xf]
        %v367 = vld [vmem:[%s312 + $0x7c] sm:$0xf]
        %v368 = vld [vmem:[%s312 + $0x80] sm:$0x1]
        %v369 = vld [vmem:[%s312 + $0x84] sm:$0xf]
        %v370 = vld [vmem:[%s312 + $0x88] sm:$0xf]
        %v371 = vld [vmem:[%s312 + $0x8c] sm:$0x1]
        %v372 = vld [vmem:[%s312 + $0x90] sm:$0xf]
        %v373 = vld [vmem:[%s312 + $0x94] sm:$0xf]
        %v374 = vld [vmem:[%s312 + $0x98] sm:$0x1]
        %v375 = vld [vmem:[%s312 + $0x9c] sm:$0xf]
        %v376 = vld [vmem:[%s312 + $0xa0] sm:$0xf]
        %v377 = vld [vmem:[%s312 + $0xa4] sm:$0x1]
        %v378 = vld [vmem:[%s312 + $0xa8] sm:$0xf]
        %v379 = vld [vmem:[%s312 + $0xac] sm:$0xf]
        %v380 = vld [vmem:[%s312 + $0xb0] sm:$0x1]
        %v381 = vld [vmem:[%s312 + $0xb4] sm:$0xf]
        %v382 = vld [vmem:[%s312 + $0xb8] sm:$0xf]
        %v383 = vld [vmem:[%s312 + $0xbc] sm:$0x1]
        %vm384 = vcmask 93184
        %385 = vst.msk [vmem:[#allocation3] sm:$0xf] %vm384, %v336
        %386 = vst.msk [vmem:[#allocation3 + $0x4] sm:$0xf] %vm384, %v337
        %vm387 = vcmask 90112
        %vm388 = vsmask.f32 256
        %vm389 = vmand %vm387, %vm388
        %v390 = vld [vmem:[#allocation3 + $0x8] sm:$0x1]
        %v391 = vsel %vm389, %v338, %v390
        %392 = vst [vmem:[#allocation3 + $0x8] sm:$0x1] %v391
        %393 = vst.msk [vmem:[#allocation3 + $0xc] sm:$0xf] %vm384, %v339
        %394 = vst.msk [vmem:[#allocation3 + $0x10] sm:$0xf] %vm384, %v340
        %v395 = vld [vmem:[#allocation3 + $0x14] sm:$0x1]
        %v396 = vsel %vm389, %v341, %v395
        %397 = vst [vmem:[#allocation3 + $0x14] sm:$0x1] %v396
        %398 = vst.msk [vmem:[#allocation3 + $0x18] sm:$0xf] %vm384, %v342
        %399 = vst.msk [vmem:[#allocation3 + $0x1c] sm:$0xf] %vm384, %v343
        %v400 = vld [vmem:[#allocation3 + $0x20] sm:$0x1]
        %v401 = vsel %vm389, %v344, %v400
        %402 = vst [vmem:[#allocation3 + $0x20] sm:$0x1] %v401
        %403 = vst.msk [vmem:[#allocation3 + $0x24] sm:$0xf] %vm384, %v345
        %404 = vst.msk [vmem:[#allocation3 + $0x28] sm:$0xf] %vm384, %v346
        %v405 = vld [vmem:[#allocation3 + $0x2c] sm:$0x1]
        %v406 = vsel %vm389, %v347, %v405
        %407 = vst [vmem:[#allocation3 + $0x2c] sm:$0x1] %v406
        %408 = vst.msk [vmem:[#allocation3 + $0x30] sm:$0xf] %vm384, %v348
        %409 = vst.msk [vmem:[#allocation3 + $0x34] sm:$0xf] %vm384, %v349
        %v410 = vld [vmem:[#allocation3 + $0x38] sm:$0x1]
        %v411 = vsel %vm389, %v350, %v410
        %412 = vst [vmem:[#allocation3 + $0x38] sm:$0x1] %v411
        %413 = vst.msk [vmem:[#allocation3 + $0x3c] sm:$0xf] %vm384, %v351
        %414 = vst.msk [vmem:[#allocation3 + $0x40] sm:$0xf] %vm384, %v352
        %v415 = vld [vmem:[#allocation3 + $0x44] sm:$0x1]
        %v416 = vsel %vm389, %v353, %v415
        %417 = vst [vmem:[#allocation3 + $0x44] sm:$0x1] %v416
        %418 = vst.msk [vmem:[#allocation3 + $0x48] sm:$0xf] %vm384, %v354
        %419 = vst.msk [vmem:[#allocation3 + $0x4c] sm:$0xf] %vm384, %v355
        %v420 = vld [vmem:[#allocation3 + $0x50] sm:$0x1]
        %v421 = vsel %vm389, %v356, %v420
        %422 = vst [vmem:[#allocation3 + $0x50] sm:$0x1] %v421
        %423 = vst.msk [vmem:[#allocation3 + $0x54] sm:$0xf] %vm384, %v357
        %424 = vst.msk [vmem:[#allocation3 + $0x58] sm:$0xf] %vm384, %v358
        %v425 = vld [vmem:[#allocation3 + $0x5c] sm:$0x1]
        %v426 = vsel %vm389, %v359, %v425
        %427 = vst [vmem:[#allocation3 + $0x5c] sm:$0x1] %v426
        %428 = vst.msk [vmem:[#allocation3 + $0x60] sm:$0xf] %vm384, %v360
        %429 = vst.msk [vmem:[#allocation3 + $0x64] sm:$0xf] %vm384, %v361
        %v430 = vld [vmem:[#allocation3 + $0x68] sm:$0x1]
        %v431 = vsel %vm389, %v362, %v430
        %432 = vst [vmem:[#allocation3 + $0x68] sm:$0x1] %v431
        %433 = vst.msk [vmem:[#allocation3 + $0x6c] sm:$0xf] %vm384, %v363
        %434 = vst.msk [vmem:[#allocation3 + $0x70] sm:$0xf] %vm384, %v364
        %v435 = vld [vmem:[#allocation3 + $0x74] sm:$0x1]
        %v436 = vsel %vm389, %v365, %v435
        %437 = vst [vmem:[#allocation3 + $0x74] sm:$0x1] %v436
        %438 = vst.msk [vmem:[#allocation3 + $0x78] sm:$0xf] %vm384, %v366
        %439 = vst.msk [vmem:[#allocation3 + $0x7c] sm:$0xf] %vm384, %v367
        %v440 = vld [vmem:[#allocation3 + $0x80] sm:$0x1]
        %v441 = vsel %vm389, %v368, %v440
        %442 = vst [vmem:[#allocation3 + $0x80] sm:$0x1] %v441
        %443 = vst.msk [vmem:[#allocation3 + $0x84] sm:$0xf] %vm384, %v369
        %444 = vst.msk [vmem:[#allocation3 + $0x88] sm:$0xf] %vm384, %v370
        %v445 = vld [vmem:[#allocation3 + $0x8c] sm:$0x1]
        %v446 = vsel %vm389, %v371, %v445
        %447 = vst [vmem:[#allocation3 + $0x8c] sm:$0x1] %v446
        %448 = vst.msk [vmem:[#allocation3 + $0x90] sm:$0xf] %vm384, %v372
        %449 = vst.msk [vmem:[#allocation3 + $0x94] sm:$0xf] %vm384, %v373
        %v450 = vld [vmem:[#allocation3 + $0x98] sm:$0x1]
        %v451 = vsel %vm389, %v374, %v450
        %452 = vst [vmem:[#allocation3 + $0x98] sm:$0x1] %v451
        %453 = vst.msk [vmem:[#allocation3 + $0x9c] sm:$0xf] %vm384, %v375
        %454 = vst.msk [vmem:[#allocation3 + $0xa0] sm:$0xf] %vm384, %v376
        %v455 = vld [vmem:[#allocation3 + $0xa4] sm:$0x1]
        %v456 = vsel %vm389, %v377, %v455
        %457 = vst [vmem:[#allocation3 + $0xa4] sm:$0x1] %v456
        %458 = vst.msk [vmem:[#allocation3 + $0xa8] sm:$0xf] %vm384, %v378
        %459 = vst.msk [vmem:[#allocation3 + $0xac] sm:$0xf] %vm384, %v379
        %v460 = vld [vmem:[#allocation3 + $0xb0] sm:$0x1]
        %v461 = vsel %vm389, %v380, %v460
        %462 = vst [vmem:[#allocation3 + $0xb0] sm:$0x1] %v461
        %463 = vst.msk [vmem:[#allocation3 + $0xb4] sm:$0xf] %vm384, %v381
        %464 = vst.msk [vmem:[#allocation3 + $0xb8] sm:$0xf] %vm384, %v382
        %v465 = vld [vmem:[#allocation3 + $0xbc] sm:$0x1]
        %v466 = vsel %vm389, %v383, %v465
        %467 = vst [vmem:[#allocation3 + $0xbc] sm:$0x1] %v466
        %v468 = vld [vmem:[%s330] sm:$0xf]
        %v469 = vld [vmem:[%s330 + $0x4] sm:$0xf]
        %v470 = vld [vmem:[%s330 + $0x8] sm:$0x1]
        %v471 = vld [vmem:[%s330 + $0xc] sm:$0xf]
        %v472 = vld [vmem:[%s330 + $0x10] sm:$0xf]
        %v473 = vld [vmem:[%s330 + $0x14] sm:$0x1]
        %s474 = scalar_lea.vmem [#allocation3], 192
        %475 = vst.msk [vmem:[%s474] sm:$0xf] %vm384, %v468
        %476 = vst.msk [vmem:[%s474 + $0x4] sm:$0xf] %vm384, %v469
        %v477 = vld [vmem:[%s474 + $0x8] sm:$0x1]
        %v478 = vsel %vm389, %v470, %v477
        %479 = vst [vmem:[%s474 + $0x8] sm:$0x1] %v478
        %480 = vst.msk [vmem:[%s474 + $0xc] sm:$0xf] %vm384, %v471
        %481 = vst.msk [vmem:[%s474 + $0x10] sm:$0xf] %vm384, %v472
        %v482 = vld [vmem:[%s474 + $0x14] sm:$0x1]
        %v483 = vsel %vm389, %v473, %v482
        %484 = vst [vmem:[%s474 + $0x14] sm:$0x1] %v483
        %vm485 = vcmask 130048
        %486 = vst.msk [vmem:[#allocation2] sm:$0xff] %vm485, 0.0
        %487 = vst.msk [vmem:[#allocation2 + $0x8] sm:$0xff] %vm485, 0.0
        %488 = vst.msk [vmem:[#allocation2 + $0x10] sm:$0xff] %vm485, 0.0
        %489 = vst.msk [vmem:[#allocation2 + $0x18] sm:$0xff] %vm485, 0.0
        %490 = vst.msk [vmem:[#allocation2 + $0x20] sm:$0xff] %vm485, 0.0
        %491 = vst.msk [vmem:[#allocation2 + $0x28] sm:$0xff] %vm485, 0.0
        %492 = vst.msk [vmem:[#allocation2 + $0x30] sm:$0xff] %vm485, 0.0
        %493 = vst.msk [vmem:[#allocation2 + $0x38] sm:$0xff] %vm485, 0.0
        %494 = vst.msk [vmem:[#allocation2 + $0x40] sm:$0xff] %vm485, 0.0
        %495 = vst.msk [vmem:[#allocation2 + $0x48] sm:$0xff] %vm485, 0.0
        %496 = vst.msk [vmem:[#allocation2 + $0x50] sm:$0xff] %vm485, 0.0
        %497 = vst.msk [vmem:[#allocation2 + $0x58] sm:$0xff] %vm485, 0.0
        %498 = vst.msk [vmem:[#allocation2 + $0x60] sm:$0xff] %vm485, 0.0
        %499 = vst.msk [vmem:[#allocation2 + $0x68] sm:$0xff] %vm485, 0.0
        %500 = vst.msk [vmem:[#allocation2 + $0x70] sm:$0xff] %vm485, 0.0
        %501 = vst.msk [vmem:[#allocation2 + $0x78] sm:$0xff] %vm485, 0.0
        %502 = vst.msk [vmem:[#allocation2 + $0x80] sm:$0xff] %vm485, 0.0
        %503 = vst.msk [vmem:[#allocation2 + $0x88] sm:$0xff] %vm485, 0.0
        %504 = vst.msk [vmem:[#allocation2 + $0x90] sm:$0xff] %vm485, 0.0
        %505 = vst.msk [vmem:[#allocation2 + $0x98] sm:$0xff] %vm485, 0.0
        %506 = vst.msk [vmem:[#allocation2 + $0xa0] sm:$0xff] %vm485, 0.0
        %507 = vst.msk [vmem:[#allocation2 + $0xa8] sm:$0xff] %vm485, 0.0
        %508 = vst.msk [vmem:[#allocation2 + $0xb0] sm:$0xff] %vm485, 0.0
        %509 = vst.msk [vmem:[#allocation2 + $0xb8] sm:$0xff] %vm485, 0.0
        %510 = vst.msk [vmem:[#allocation2 + $0xc0] sm:$0xff] %vm485, 0.0
        %511 = vst.msk [vmem:[#allocation2 + $0xc8] sm:$0xff] %vm485, 0.0
        %512 = vst.msk [vmem:[#allocation2 + $0xd0] sm:$0xff] %vm485, 0.0
        %513 = vst.msk [vmem:[#allocation2 + $0xd8] sm:$0xff] %vm485, 0.0
        %514 = vst.msk [vmem:[#allocation2 + $0xe0] sm:$0xff] %vm485, 0.0
        %515 = vst.msk [vmem:[#allocation2 + $0xe8] sm:$0xff] %vm485, 0.0
        %516 = vst.msk [vmem:[#allocation2 + $0xf0] sm:$0xff] %vm485, 0.0
        %517 = vst.msk [vmem:[#allocation2 + $0xf8] sm:$0xff] %vm485, 0.0
        %v518 = vld [vmem:[#allocation3] sm:$0xf]
        %v519 = vld [vmem:[#allocation3 + $0x4] sm:$0xf]
        %v520 = vld [vmem:[#allocation3 + $0xc] sm:$0xf]
        %v521 = vld [vmem:[#allocation3 + $0x10] sm:$0xf]
        %v522 = vld [vmem:[#allocation3 + $0x18] sm:$0xf]
        %v523 = vld [vmem:[#allocation3 + $0x1c] sm:$0xf]
        %v524 = vld [vmem:[#allocation3 + $0x24] sm:$0xf]
        %v525 = vld [vmem:[#allocation3 + $0x28] sm:$0xf]
        %v526 = vld [vmem:[#allocation3 + $0x30] sm:$0xf]
        %v527 = vld [vmem:[#allocation3 + $0x34] sm:$0xf]
        %v528 = vld [vmem:[#allocation3 + $0x3c] sm:$0xf]
        %v529 = vld [vmem:[#allocation3 + $0x40] sm:$0xf]
        %v530 = vld [vmem:[#allocation3 + $0x48] sm:$0xf]
        %v531 = vld [vmem:[#allocation3 + $0x4c] sm:$0xf]
        %v532 = vld [vmem:[#allocation3 + $0x54] sm:$0xf]
        %v533 = vld [vmem:[#allocation3 + $0x58] sm:$0xf]
        %v534 = vld [vmem:[#allocation3 + $0x60] sm:$0xf]
        %v535 = vld [vmem:[#allocation3 + $0x64] sm:$0xf]
        %v536 = vld [vmem:[#allocation3 + $0x6c] sm:$0xf]
        %v537 = vld [vmem:[#allocation3 + $0x70] sm:$0xf]
        %v538 = vld [vmem:[#allocation3 + $0x78] sm:$0xf]
        %v539 = vld [vmem:[#allocation3 + $0x7c] sm:$0xf]
        %v540 = vld [vmem:[#allocation3 + $0x84] sm:$0xf]
        %v541 = vld [vmem:[#allocation3 + $0x88] sm:$0xf]
        %v542 = vld [vmem:[#allocation3 + $0x90] sm:$0xf]
        %v543 = vld [vmem:[#allocation3 + $0x94] sm:$0xf]
        %v544 = vld [vmem:[#allocation3 + $0x9c] sm:$0xf]
        %v545 = vld [vmem:[#allocation3 + $0xa0] sm:$0xf]
        %v546 = vld [vmem:[#allocation3 + $0xa8] sm:$0xf]
        %v547 = vld [vmem:[#allocation3 + $0xac] sm:$0xf]
        %v548 = vld [vmem:[#allocation3 + $0xb4] sm:$0xf]
        %v549 = vld [vmem:[#allocation3 + $0xb8] sm:$0xf]
        %v550 = vld [vmem:[#allocation2] sm:$0xff]
        %v551 = vld [vmem:[#allocation2 + $0x8] sm:$0xff]
        %v552 = vld [vmem:[#allocation2 + $0x10] sm:$0xff]
        %v553 = vld [vmem:[#allocation2 + $0x18] sm:$0xff]
        %v554 = vld [vmem:[#allocation2 + $0x20] sm:$0xff]
        %v555 = vld [vmem:[#allocation2 + $0x28] sm:$0xff]
        %v556 = vld [vmem:[#allocation2 + $0x30] sm:$0xff]
        %v557 = vld [vmem:[#allocation2 + $0x38] sm:$0xff]
        %v558 = vld [vmem:[#allocation2 + $0x40] sm:$0xff]
        %v559 = vld [vmem:[#allocation2 + $0x48] sm:$0xff]
        %v560 = vld [vmem:[#allocation2 + $0x50] sm:$0xff]
        %v561 = vld [vmem:[#allocation2 + $0x58] sm:$0xff]
        %v562 = vld [vmem:[#allocation2 + $0x60] sm:$0xff]
        %v563 = vld [vmem:[#allocation2 + $0x68] sm:$0xff]
        %v564 = vld [vmem:[#allocation2 + $0x70] sm:$0xff]
        %v565 = vld [vmem:[#allocation2 + $0x78] sm:$0xff]
        %v566 = vld [vmem:[#allocation2 + $0x80] sm:$0xff]
        %v567 = vld [vmem:[#allocation2 + $0x88] sm:$0xff]
        %v568 = vld [vmem:[#allocation2 + $0x90] sm:$0xff]
        %v569 = vld [vmem:[#allocation2 + $0x98] sm:$0xff]
        %v570 = vld [vmem:[#allocation2 + $0xa0] sm:$0xff]
        %v571 = vld [vmem:[#allocation2 + $0xa8] sm:$0xff]
        %v572 = vld [vmem:[#allocation2 + $0xb0] sm:$0xff]
        %v573 = vld [vmem:[#allocation2 + $0xb8] sm:$0xff]
        %v574 = vld [vmem:[#allocation2 + $0xc0] sm:$0xff]
        %v575 = vld [vmem:[#allocation2 + $0xc8] sm:$0xff]
        %v576 = vld [vmem:[#allocation2 + $0xd0] sm:$0xff]
        %v577 = vld [vmem:[#allocation2 + $0xd8] sm:$0xff]
        %v578 = vld [vmem:[#allocation2 + $0xe0] sm:$0xff]
        %v579 = vld [vmem:[#allocation2 + $0xe8] sm:$0xff]
        %v580 = vld [vmem:[#allocation2 + $0xf0] sm:$0xff]
        %v581 = vld [vmem:[#allocation2 + $0xf8] sm:$0xff]
        %v582 = vld [vmem:[%s2] sm:$0xf]
        %v583 = vld [vmem:[%s2 + $0x4] sm:$0x3]
        %v616 = vunpack.c.l.b16 %v518
        %v617 = vunpack.c.l.b16 %v519
        %v618 = vunpack.c.l.b16 %v520
        %v619 = vunpack.c.l.b16 %v521
        %v620 = vunpack.c.l.b16 %v522
        %v621 = vunpack.c.l.b16 %v523
        %v622 = vunpack.c.l.b16 %v524
        %v623 = vunpack.c.l.b16 %v525
        %v624 = vunpack.c.l.b16 %v526
        %v625 = vunpack.c.l.b16 %v527
        %v626 = vunpack.c.l.b16 %v528
        %v627 = vunpack.c.l.b16 %v529
        %v628 = vunpack.c.l.b16 %v530
        %v629 = vunpack.c.l.b16 %v531
        %v630 = vunpack.c.l.b16 %v532
        %v631 = vunpack.c.l.b16 %v533
        %v632 = vunpack.c.l.b16 %v534
        %v633 = vunpack.c.l.b16 %v535
        %v634 = vunpack.c.l.b16 %v536
        %v635 = vunpack.c.l.b16 %v537
        %v636 = vunpack.c.l.b16 %v538
        %v637 = vunpack.c.l.b16 %v539
        %v638 = vunpack.c.l.b16 %v540
        %v639 = vunpack.c.l.b16 %v541
        %v640 = vunpack.c.l.b16 %v542
        %v641 = vunpack.c.l.b16 %v543
        %v642 = vunpack.c.l.b16 %v544
        %v643 = vunpack.c.l.b16 %v545
        %v644 = vunpack.c.l.b16 %v546
        %v645 = vunpack.c.l.b16 %v547
        %v646 = vunpack.c.l.b16 %v548
        %v647 = vunpack.c.l.b16 %v549
        %v648 = vpack.c.b16 %v617, %v616
        %v649 = vpack.c.b16 %v619, %v618
        %v650 = vpack.c.b16 %v621, %v620
        %v651 = vpack.c.b16 %v623, %v622
        %v652 = vpack.c.b16 %v625, %v624
        %v653 = vpack.c.b16 %v627, %v626
        %v654 = vpack.c.b16 %v629, %v628
        %v655 = vpack.c.b16 %v631, %v630
        %v656 = vpack.c.b16 %v633, %v632
        %v657 = vpack.c.b16 %v635, %v634
        %v658 = vpack.c.b16 %v637, %v636
        %v659 = vpack.c.b16 %v639, %v638
        %v660 = vpack.c.b16 %v641, %v640
        %v661 = vpack.c.b16 %v643, %v642
        %v662 = vpack.c.b16 %v645, %v644
        %v663 = vpack.c.b16 %v647, %v646
        %v666 = vunpack.c.l.b16 %v582
        %v667 = vunpack.c.l.b16 %v583
        %v668 = vpack.c.b16 %v667, %v666
        %vm669 = vcmask 97280
        %v671 = vsel %vm669, %v648, 0
        %v674 = vsel %vm669, %v649, 0
        %v677 = vsel %vm669, %v650, 0
        %v680 = vsel %vm669, %v651, 0
        %v683 = vsel %vm669, %v652, 0
        %v686 = vsel %vm669, %v653, 0
        %v689 = vsel %vm669, %v654, 0
        %v692 = vsel %vm669, %v655, 0
        %v695 = vsel %vm669, %v656, 0
        %v698 = vsel %vm669, %v657, 0
        %v701 = vsel %vm669, %v658, 0
        %v704 = vsel %vm669, %v659, 0
        %v707 = vsel %vm669, %v660, 0
        %v710 = vsel %vm669, %v661, 0
        %v713 = vsel %vm669, %v662, 0
        %v716 = vsel %vm669, %v663, 0
        %vm718 = vcmask 1045504
        %v720 = vsel %vm718, %v668, 0
        %722 = vmatpush.bf16.msra.mxu0 0
        %723 = vmatpush.bf16.msra.mxu0 0
        %724 = vmatpush.bf16.msra.mxu0 0
        %725 = vmatpush.bf16.msra.mxu0 0
        %726 = vmatpush.bf16.msra.mxu0 0
        %727 = vmatpush.bf16.msra.mxu0 0
        %728 = vmatpush.bf16.msra.mxu0 0
        %729 = vmatpush.bf16.msra.mxu0 %v720
        %730 = vmatmul.bf16.gmra.mxu0 %v671
        %v731 = vpop.f32.mrf.mxu0
        %v732 = vadd.f32 0.0, %v731
        %v733 = vpop.f32.mrf.mxu0
        %v734 = vadd.f32 0.0, %v733
        %735 = vmatmul.bf16.gmra.mxu0 %v674
        %v736 = vpop.f32.mrf.mxu0
        %v737 = vadd.f32 0.0, %v736
        %v738 = vpop.f32.mrf.mxu0
        %v739 = vadd.f32 0.0, %v738
        %740 = vmatmul.bf16.gmra.mxu0 %v677
        %v741 = vpop.f32.mrf.mxu0
        %v742 = vadd.f32 0.0, %v741
        %v743 = vpop.f32.mrf.mxu0
        %v744 = vadd.f32 0.0, %v743
        %745 = vmatmul.bf16.gmra.mxu0 %v680
        %v746 = vpop.f32.mrf.mxu0
        %v747 = vadd.f32 0.0, %v746
        %v748 = vpop.f32.mrf.mxu0
        %v749 = vadd.f32 0.0, %v748
        %750 = vmatmul.bf16.gmra.mxu0 %v683
        %v751 = vpop.f32.mrf.mxu0
        %v752 = vadd.f32 0.0, %v751
        %v753 = vpop.f32.mrf.mxu0
        %v754 = vadd.f32 0.0, %v753
        %755 = vmatmul.bf16.gmra.mxu0 %v686
        %v756 = vpop.f32.mrf.mxu0
        %v757 = vadd.f32 0.0, %v756
        %v758 = vpop.f32.mrf.mxu0
        %v759 = vadd.f32 0.0, %v758
        %760 = vmatmul.bf16.gmra.mxu0 %v689
        %v761 = vpop.f32.mrf.mxu0
        %v762 = vadd.f32 0.0, %v761
        %v763 = vpop.f32.mrf.mxu0
        %v764 = vadd.f32 0.0, %v763
        %765 = vmatmul.bf16.gmra.mxu0 %v692
        %v766 = vpop.f32.mrf.mxu0
        %v767 = vadd.f32 0.0, %v766
        %v768 = vpop.f32.mrf.mxu0
        %v769 = vadd.f32 0.0, %v768
        %770 = vmatmul.bf16.gmra.mxu0 %v695
        %v771 = vpop.f32.mrf.mxu0
        %v772 = vadd.f32 0.0, %v771
        %v773 = vpop.f32.mrf.mxu0
        %v774 = vadd.f32 0.0, %v773
        %775 = vmatmul.bf16.gmra.mxu0 %v698
        %v776 = vpop.f32.mrf.mxu0
        %v777 = vadd.f32 0.0, %v776
        %v778 = vpop.f32.mrf.mxu0
        %v779 = vadd.f32 0.0, %v778
        %780 = vmatmul.bf16.gmra.mxu0 %v701
        %v781 = vpop.f32.mrf.mxu0
        %v782 = vadd.f32 0.0, %v781
        %v783 = vpop.f32.mrf.mxu0
        %v784 = vadd.f32 0.0, %v783
        %785 = vmatmul.bf16.gmra.mxu0 %v704
        %v786 = vpop.f32.mrf.mxu0
        %v787 = vadd.f32 0.0, %v786
        %v788 = vpop.f32.mrf.mxu0
        %v789 = vadd.f32 0.0, %v788
        %790 = vmatmul.bf16.gmra.mxu0 %v707
        %v791 = vpop.f32.mrf.mxu0
        %v792 = vadd.f32 0.0, %v791
        %v793 = vpop.f32.mrf.mxu0
        %v794 = vadd.f32 0.0, %v793
        %795 = vmatmul.bf16.gmra.mxu0 %v710
        %v796 = vpop.f32.mrf.mxu0
        %v797 = vadd.f32 0.0, %v796
        %v798 = vpop.f32.mrf.mxu0
        %v799 = vadd.f32 0.0, %v798
        %800 = vmatmul.bf16.gmra.mxu0 %v713
        %v801 = vpop.f32.mrf.mxu0
        %v802 = vadd.f32 0.0, %v801
        %v803 = vpop.f32.mrf.mxu0
        %v804 = vadd.f32 0.0, %v803
        %805 = vmatmul.bf16.gmra.mxu0 %v716
        %v806 = vpop.f32.mrf.mxu0
        %v807 = vadd.f32 0.0, %v806
        %v808 = vpop.f32.mrf.mxu0
        %v809 = vadd.f32 0.0, %v808
        %810 = vdwg.mxu0
        %v811 = vadd.f32 %v550, %v732
        %v812 = vadd.f32 %v551, %v734
        %v813 = vadd.f32 %v552, %v737
        %v814 = vadd.f32 %v553, %v739
        %v815 = vadd.f32 %v554, %v742
        %v816 = vadd.f32 %v555, %v744
        %v817 = vadd.f32 %v556, %v747
        %v818 = vadd.f32 %v557, %v749
        %v819 = vadd.f32 %v558, %v752
        %v820 = vadd.f32 %v559, %v754
        %v821 = vadd.f32 %v560, %v757
        %v822 = vadd.f32 %v561, %v759
        %v823 = vadd.f32 %v562, %v762
        %v824 = vadd.f32 %v563, %v764
        %v825 = vadd.f32 %v564, %v767
        %v826 = vadd.f32 %v565, %v769
        %v827 = vadd.f32 %v566, %v772
        %v828 = vadd.f32 %v567, %v774
        %v829 = vadd.f32 %v568, %v777
        %v830 = vadd.f32 %v569, %v779
        %v831 = vadd.f32 %v570, %v782
        %v832 = vadd.f32 %v571, %v784
        %v833 = vadd.f32 %v572, %v787
        %v834 = vadd.f32 %v573, %v789
        %v835 = vadd.f32 %v574, %v792
        %v836 = vadd.f32 %v575, %v794
        %v837 = vadd.f32 %v576, %v797
        %v838 = vadd.f32 %v577, %v799
        %v839 = vadd.f32 %v578, %v802
        %v840 = vadd.f32 %v579, %v804
        %v841 = vadd.f32 %v580, %v807
        %v842 = vadd.f32 %v581, %v809
        %843 = vst.msk [vmem:[#allocation2] sm:$0xff] %vm485, %v811
        %844 = vst.msk [vmem:[#allocation2 + $0x8] sm:$0xff] %vm485, %v812
        %845 = vst.msk [vmem:[#allocation2 + $0x10] sm:$0xff] %vm485, %v813
        %846 = vst.msk [vmem:[#allocation2 + $0x18] sm:$0xff] %vm485, %v814
        %847 = vst.msk [vmem:[#allocation2 + $0x20] sm:$0xff] %vm485, %v815
        %848 = vst.msk [vmem:[#allocation2 + $0x28] sm:$0xff] %vm485, %v816
        %849 = vst.msk [vmem:[#allocation2 + $0x30] sm:$0xff] %vm485, %v817
        %850 = vst.msk [vmem:[#allocation2 + $0x38] sm:$0xff] %vm485, %v818
        %851 = vst.msk [vmem:[#allocation2 + $0x40] sm:$0xff] %vm485, %v819
        %852 = vst.msk [vmem:[#allocation2 + $0x48] sm:$0xff] %vm485, %v820
        %853 = vst.msk [vmem:[#allocation2 + $0x50] sm:$0xff] %vm485, %v821
        %854 = vst.msk [vmem:[#allocation2 + $0x58] sm:$0xff] %vm485, %v822
        %855 = vst.msk [vmem:[#allocation2 + $0x60] sm:$0xff] %vm485, %v823
        %856 = vst.msk [vmem:[#allocation2 + $0x68] sm:$0xff] %vm485, %v824
        %857 = vst.msk [vmem:[#allocation2 + $0x70] sm:$0xff] %vm485, %v825
        %858 = vst.msk [vmem:[#allocation2 + $0x78] sm:$0xff] %vm485, %v826
        %859 = vst.msk [vmem:[#allocation2 + $0x80] sm:$0xff] %vm485, %v827
        %860 = vst.msk [vmem:[#allocation2 + $0x88] sm:$0xff] %vm485, %v828
        %861 = vst.msk [vmem:[#allocation2 + $0x90] sm:$0xff] %vm485, %v829
        %862 = vst.msk [vmem:[#allocation2 + $0x98] sm:$0xff] %vm485, %v830
        %863 = vst.msk [vmem:[#allocation2 + $0xa0] sm:$0xff] %vm485, %v831
        %864 = vst.msk [vmem:[#allocation2 + $0xa8] sm:$0xff] %vm485, %v832
        %865 = vst.msk [vmem:[#allocation2 + $0xb0] sm:$0xff] %vm485, %v833
        %866 = vst.msk [vmem:[#allocation2 + $0xb8] sm:$0xff] %vm485, %v834
        %867 = vst.msk [vmem:[#allocation2 + $0xc0] sm:$0xff] %vm485, %v835
        %868 = vst.msk [vmem:[#allocation2 + $0xc8] sm:$0xff] %vm485, %v836
        %869 = vst.msk [vmem:[#allocation2 + $0xd0] sm:$0xff] %vm485, %v837
        %870 = vst.msk [vmem:[#allocation2 + $0xd8] sm:$0xff] %vm485, %v838
        %871 = vst.msk [vmem:[#allocation2 + $0xe0] sm:$0xff] %vm485, %v839
        %872 = vst.msk [vmem:[#allocation2 + $0xe8] sm:$0xff] %vm485, %v840
        %873 = vst.msk [vmem:[#allocation2 + $0xf0] sm:$0xff] %vm485, %v841
        %874 = vst.msk [vmem:[#allocation2 + $0xf8] sm:$0xff] %vm485, %v842
        %v875 = vld [vmem:[#allocation3] sm:$0xf]
        %v876 = vld [vmem:[#allocation3 + $0x4] sm:$0xf]
        %v877 = vld [vmem:[#allocation3 + $0x8] sm:$0x1]
        %v878 = vld [vmem:[#allocation3 + $0xc] sm:$0xf]
        %v879 = vld [vmem:[#allocation3 + $0x10] sm:$0xf]
        %v880 = vld [vmem:[#allocation3 + $0x14] sm:$0x1]
        %v881 = vld [vmem:[#allocation3 + $0x18] sm:$0xf]
        %v882 = vld [vmem:[#allocation3 + $0x1c] sm:$0xf]
        %v883 = vld [vmem:[#allocation3 + $0x20] sm:$0x1]
        %v884 = vld [vmem:[#allocation3 + $0x24] sm:$0xf]
        %v885 = vld [vmem:[#allocation3 + $0x28] sm:$0xf]
        %v886 = vld [vmem:[#allocation3 + $0x2c] sm:$0x1]
        %v887 = vld [vmem:[#allocation3 + $0x30] sm:$0xf]
        %v888 = vld [vmem:[#allocation3 + $0x34] sm:$0xf]
        %v889 = vld [vmem:[#allocation3 + $0x38] sm:$0x1]
        %v890 = vld [vmem:[#allocation3 + $0x3c] sm:$0xf]
        %v891 = vld [vmem:[#allocation3 + $0x40] sm:$0xf]
        %v892 = vld [vmem:[#allocation3 + $0x44] sm:$0x1]
        %v893 = vld [vmem:[#allocation3 + $0x48] sm:$0xf]
        %v894 = vld [vmem:[#allocation3 + $0x4c] sm:$0xf]
        %v895 = vld [vmem:[#allocation3 + $0x50] sm:$0x1]
        %v896 = vld [vmem:[#allocation3 + $0x54] sm:$0xf]
        %v897 = vld [vmem:[#allocation3 + $0x58] sm:$0xf]
        %v898 = vld [vmem:[#allocation3 + $0x5c] sm:$0x1]
        %v899 = vld [vmem:[#allocation3 + $0x60] sm:$0xf]
        %v900 = vld [vmem:[#allocation3 + $0x64] sm:$0xf]
        %v901 = vld [vmem:[#allocation3 + $0x68] sm:$0x1]
        %v902 = vld [vmem:[#allocation3 + $0x6c] sm:$0xf]
        %v903 = vld [vmem:[#allocation3 + $0x70] sm:$0xf]
        %v904 = vld [vmem:[#allocation3 + $0x74] sm:$0x1]
        %v905 = vld [vmem:[#allocation3 + $0x78] sm:$0xf]
        %v906 = vld [vmem:[#allocation3 + $0x7c] sm:$0xf]
        %v907 = vld [vmem:[#allocation3 + $0x80] sm:$0x1]
        %v908 = vld [vmem:[#allocation3 + $0x84] sm:$0xf]
        %v909 = vld [vmem:[#allocation3 + $0x88] sm:$0xf]
        %v910 = vld [vmem:[#allocation3 + $0x8c] sm:$0x1]
        %v911 = vld [vmem:[#allocation3 + $0x90] sm:$0xf]
        %v912 = vld [vmem:[#allocation3 + $0x94] sm:$0xf]
        %v913 = vld [vmem:[#allocation3 + $0x98] sm:$0x1]
        %v914 = vld [vmem:[#allocation3 + $0x9c] sm:$0xf]
        %v915 = vld [vmem:[#allocation3 + $0xa0] sm:$0xf]
        %v916 = vld [vmem:[#allocation3 + $0xa4] sm:$0x1]
        %v917 = vld [vmem:[#allocation3 + $0xa8] sm:$0xf]
        %v918 = vld [vmem:[#allocation3 + $0xac] sm:$0xf]
        %v919 = vld [vmem:[#allocation3 + $0xb0] sm:$0x1]
        %v920 = vld [vmem:[#allocation3 + $0xb4] sm:$0xf]
        %v921 = vld [vmem:[#allocation3 + $0xb8] sm:$0xf]
        %v922 = vld [vmem:[#allocation3 + $0xbc] sm:$0x1]
        %vm923 = vsmask.f32 3328
        %vm924 = vsmask.f32 7440
        %vm925 = vmor %vm923, %vm924
        %v927 = vshrl.u32 %v875, 16
        %v929 = vrot.slane %v927, 4
        %v930 = vshll.u32 %v875, 16
        %v932 = vrot.slane %v930, 5
        %v933 = vor.u32 %v929, %v932
        %v934 = vrot.slane %v933, 4
        %v936 = vshll.u32 %v876, 16
        %v938 = vrot.slane %v936, 5
        %v939 = vsel %vm925, %v934, %v938
        %v940 = vshrl.u32 %v876, 16
        %v942 = vrot.slane %v940, 4
        %v943 = vor.u32 %v942, %v938
        %v944 = vrot.slane %v943, 4
        %v946 = vshll.u32 %v877, 16
        %v948 = vrot.slane %v946, 5
        %v949 = vsel %vm925, %v944, %v948
        %v951 = vshrl.u32 %v878, 16
        %v953 = vrot.slane %v951, 4
        %v954 = vshll.u32 %v878, 16
        %v956 = vrot.slane %v954, 5
        %v957 = vor.u32 %v953, %v956
        %v958 = vrot.slane %v957, 4
        %v960 = vshll.u32 %v879, 16
        %v962 = vrot.slane %v960, 5
        %v963 = vsel %vm925, %v958, %v962
        %v964 = vshrl.u32 %v879, 16
        %v966 = vrot.slane %v964, 4
        %v967 = vor.u32 %v966, %v962
        %v968 = vrot.slane %v967, 4
        %v970 = vshll.u32 %v880, 16
        %v972 = vrot.slane %v970, 5
        %v973 = vsel %vm925, %v968, %v972
        %v975 = vshrl.u32 %v881, 16
        %v977 = vrot.slane %v975, 4
        %v978 = vshll.u32 %v881, 16
        %v980 = vrot.slane %v978, 5
        %v981 = vor.u32 %v977, %v980
        %v982 = vrot.slane %v981, 4
        %v984 = vshll.u32 %v882, 16
        %v986 = vrot.slane %v984, 5
        %v987 = vsel %vm925, %v982, %v986
        %v988 = vshrl.u32 %v882, 16
        %v990 = vrot.slane %v988, 4
        %v991 = vor.u32 %v990, %v986
        %v992 = vrot.slane %v991, 4
        %v994 = vshll.u32 %v883, 16
        %v996 = vrot.slane %v994, 5
        %v997 = vsel %vm925, %v992, %v996
        %v999 = vshrl.u32 %v884, 16
        %v1001 = vrot.slane %v999, 4
        %v1002 = vshll.u32 %v884, 16
        %v1004 = vrot.slane %v1002, 5
        %v1005 = vor.u32 %v1001, %v1004
        %v1006 = vrot.slane %v1005, 4
        %v1008 = vshll.u32 %v885, 16
        %v1010 = vrot.slane %v1008, 5
        %v1011 = vsel %vm925, %v1006, %v1010
        %v1012 = vshrl.u32 %v885, 16
        %v1014 = vrot.slane %v1012, 4
        %v1015 = vor.u32 %v1014, %v1010
        %v1016 = vrot.slane %v1015, 4
        %v1018 = vshll.u32 %v886, 16
        %v1020 = vrot.slane %v1018, 5
        %v1021 = vsel %vm925, %v1016, %v1020
        %v1023 = vshrl.u32 %v887, 16
        %v1025 = vrot.slane %v1023, 4
        %v1026 = vshll.u32 %v887, 16
        %v1028 = vrot.slane %v1026, 5
        %v1029 = vor.u32 %v1025, %v1028
        %v1030 = vrot.slane %v1029, 4
        %v1032 = vshll.u32 %v888, 16
        %v1034 = vrot.slane %v1032, 5
        %v1035 = vsel %vm925, %v1030, %v1034
        %v1036 = vshrl.u32 %v888, 16
        %v1038 = vrot.slane %v1036, 4
        %v1039 = vor.u32 %v1038, %v1034
        %v1040 = vrot.slane %v1039, 4
        %v1042 = vshll.u32 %v889, 16
        %v1044 = vrot.slane %v1042, 5
        %v1045 = vsel %vm925, %v1040, %v1044
        %v1047 = vshrl.u32 %v890, 16
        %v1049 = vrot.slane %v1047, 4
        %v1050 = vshll.u32 %v890, 16
        %v1052 = vrot.slane %v1050, 5
        %v1053 = vor.u32 %v1049, %v1052
        %v1054 = vrot.slane %v1053, 4
        %v1056 = vshll.u32 %v891, 16
        %v1058 = vrot.slane %v1056, 5
        %v1059 = vsel %vm925, %v1054, %v1058
        %v1060 = vshrl.u32 %v891, 16
        %v1062 = vrot.slane %v1060, 4
        %v1063 = vor.u32 %v1062, %v1058
        %v1064 = vrot.slane %v1063, 4
        %v1066 = vshll.u32 %v892, 16
        %v1068 = vrot.slane %v1066, 5
        %v1069 = vsel %vm925, %v1064, %v1068
        %v1071 = vshrl.u32 %v893, 16
        %v1073 = vrot.slane %v1071, 4
        %v1074 = vshll.u32 %v893, 16
        %v1076 = vrot.slane %v1074, 5
        %v1077 = vor.u32 %v1073, %v1076
        %v1078 = vrot.slane %v1077, 4
        %v1080 = vshll.u32 %v894, 16
        %v1082 = vrot.slane %v1080, 5
        %v1083 = vsel %vm925, %v1078, %v1082
        %v1084 = vshrl.u32 %v894, 16
        %v1086 = vrot.slane %v1084, 4
        %v1087 = vor.u32 %v1086, %v1082
        %v1088 = vrot.slane %v1087, 4
        %v1090 = vshll.u32 %v895, 16
        %v1092 = vrot.slane %v1090, 5
        %v1093 = vsel %vm925, %v1088, %v1092
        %v1095 = vshrl.u32 %v896, 16
        %v1097 = vrot.slane %v1095, 4
        %v1098 = vshll.u32 %v896, 16
        %v1100 = vrot.slane %v1098, 5
        %v1101 = vor.u32 %v1097, %v1100
        %v1102 = vrot.slane %v1101, 4
        %v1104 = vshll.u32 %v897, 16
        %v1106 = vrot.slane %v1104, 5
        %v1107 = vsel %vm925, %v1102, %v1106
        %v1108 = vshrl.u32 %v897, 16
        %v1110 = vrot.slane %v1108, 4
        %v1111 = vor.u32 %v1110, %v1106
        %v1112 = vrot.slane %v1111, 4
        %v1114 = vshll.u32 %v898, 16
        %v1116 = vrot.slane %v1114, 5
        %v1117 = vsel %vm925, %v1112, %v1116
        %v1119 = vshrl.u32 %v899, 16
        %v1121 = vrot.slane %v1119, 4
        %v1122 = vshll.u32 %v899, 16
        %v1124 = vrot.slane %v1122, 5
        %v1125 = vor.u32 %v1121, %v1124
        %v1126 = vrot.slane %v1125, 4
        %v1128 = vshll.u32 %v900, 16
        %v1130 = vrot.slane %v1128, 5
        %v1131 = vsel %vm925, %v1126, %v1130
        %v1132 = vshrl.u32 %v900, 16
        %v1134 = vrot.slane %v1132, 4
        %v1135 = vor.u32 %v1134, %v1130
        %v1136 = vrot.slane %v1135, 4
        %v1138 = vshll.u32 %v901, 16
        %v1140 = vrot.slane %v1138, 5
        %v1141 = vsel %vm925, %v1136, %v1140
        %v1143 = vshrl.u32 %v902, 16
        %v1145 = vrot.slane %v1143, 4
        %v1146 = vshll.u32 %v902, 16
        %v1148 = vrot.slane %v1146, 5
        %v1149 = vor.u32 %v1145, %v1148
        %v1150 = vrot.slane %v1149, 4
        %v1152 = vshll.u32 %v903, 16
        %v1154 = vrot.slane %v1152, 5
        %v1155 = vsel %vm925, %v1150, %v1154
        %v1156 = vshrl.u32 %v903, 16
        %v1158 = vrot.slane %v1156, 4
        %v1159 = vor.u32 %v1158, %v1154
        %v1160 = vrot.slane %v1159, 4
        %v1162 = vshll.u32 %v904, 16
        %v1164 = vrot.slane %v1162, 5
        %v1165 = vsel %vm925, %v1160, %v1164
        %v1167 = vshrl.u32 %v905, 16
        %v1169 = vrot.slane %v1167, 4
        %v1170 = vshll.u32 %v905, 16
        %v1172 = vrot.slane %v1170, 5
        %v1173 = vor.u32 %v1169, %v1172
        %v1174 = vrot.slane %v1173, 4
        %v1176 = vshll.u32 %v906, 16
        %v1178 = vrot.slane %v1176, 5
        %v1179 = vsel %vm925, %v1174, %v1178
        %v1180 = vshrl.u32 %v906, 16
        %v1182 = vrot.slane %v1180, 4
        %v1183 = vor.u32 %v1182, %v1178
        %v1184 = vrot.slane %v1183, 4
        %v1186 = vshll.u32 %v907, 16
        %v1188 = vrot.slane %v1186, 5
        %v1189 = vsel %vm925, %v1184, %v1188
        %v1191 = vshrl.u32 %v908, 16
        %v1193 = vrot.slane %v1191, 4
        %v1194 = vshll.u32 %v908, 16
        %v1196 = vrot.slane %v1194, 5
        %v1197 = vor.u32 %v1193, %v1196
        %v1198 = vrot.slane %v1197, 4
        %v1200 = vshll.u32 %v909, 16
        %v1202 = vrot.slane %v1200, 5
        %v1203 = vsel %vm925, %v1198, %v1202
        %v1204 = vshrl.u32 %v909, 16
        %v1206 = vrot.slane %v1204, 4
        %v1207 = vor.u32 %v1206, %v1202
        %v1208 = vrot.slane %v1207, 4
        %v1210 = vshll.u32 %v910, 16
        %v1212 = vrot.slane %v1210, 5
        %v1213 = vsel %vm925, %v1208, %v1212
        %v1215 = vshrl.u32 %v911, 16
        %v1217 = vrot.slane %v1215, 4
        %v1218 = vshll.u32 %v911, 16
        %v1220 = vrot.slane %v1218, 5
        %v1221 = vor.u32 %v1217, %v1220
        %v1222 = vrot.slane %v1221, 4
        %v1224 = vshll.u32 %v912, 16
        %v1226 = vrot.slane %v1224, 5
        %v1227 = vsel %vm925, %v1222, %v1226
        %v1228 = vshrl.u32 %v912, 16
        %v1230 = vrot.slane %v1228, 4
        %v1231 = vor.u32 %v1230, %v1226
        %v1232 = vrot.slane %v1231, 4
        %v1234 = vshll.u32 %v913, 16
        %v1236 = vrot.slane %v1234, 5
        %v1237 = vsel %vm925, %v1232, %v1236
        %v1239 = vshrl.u32 %v914, 16
        %v1241 = vrot.slane %v1239, 4
        %v1242 = vshll.u32 %v914, 16
        %v1244 = vrot.slane %v1242, 5
        %v1245 = vor.u32 %v1241, %v1244
        %v1246 = vrot.slane %v1245, 4
        %v1248 = vshll.u32 %v915, 16
        %v1250 = vrot.slane %v1248, 5
        %v1251 = vsel %vm925, %v1246, %v1250
        %v1252 = vshrl.u32 %v915, 16
        %v1254 = vrot.slane %v1252, 4
        %v1255 = vor.u32 %v1254, %v1250
        %v1256 = vrot.slane %v1255, 4
        %v1258 = vshll.u32 %v916, 16
        %v1260 = vrot.slane %v1258, 5
        %v1261 = vsel %vm925, %v1256, %v1260
        %v1263 = vshrl.u32 %v917, 16
        %v1265 = vrot.slane %v1263, 4
        %v1266 = vshll.u32 %v917, 16
        %v1268 = vrot.slane %v1266, 5
        %v1269 = vor.u32 %v1265, %v1268
        %v1270 = vrot.slane %v1269, 4
        %v1272 = vshll.u32 %v918, 16
        %v1274 = vrot.slane %v1272, 5
        %v1275 = vsel %vm925, %v1270, %v1274
        %v1276 = vshrl.u32 %v918, 16
        %v1278 = vrot.slane %v1276, 4
        %v1279 = vor.u32 %v1278, %v1274
        %v1280 = vrot.slane %v1279, 4
        %v1282 = vshll.u32 %v919, 16
        %v1284 = vrot.slane %v1282, 5
        %v1285 = vsel %vm925, %v1280, %v1284
        %v1287 = vshrl.u32 %v920, 16
        %v1289 = vrot.slane %v1287, 4
        %v1290 = vshll.u32 %v920, 16
        %v1292 = vrot.slane %v1290, 5
        %v1293 = vor.u32 %v1289, %v1292
        %v1294 = vrot.slane %v1293, 4
        %v1296 = vshll.u32 %v921, 16
        %v1298 = vrot.slane %v1296, 5
        %v1299 = vsel %vm925, %v1294, %v1298
        %v1300 = vshrl.u32 %v921, 16
        %v1302 = vrot.slane %v1300, 4
        %v1303 = vor.u32 %v1302, %v1298
        %v1304 = vrot.slane %v1303, 4
        %v1306 = vshll.u32 %v922, 16
        %v1308 = vrot.slane %v1306, 5
        %v1309 = vsel %vm925, %v1304, %v1308
        %v1310 = vld [vmem:[#allocation2] sm:$0xff]
        %v1311 = vld [vmem:[#allocation2 + $0x8] sm:$0xff]
        %v1312 = vld [vmem:[#allocation2 + $0x10] sm:$0xff]
        %v1313 = vld [vmem:[#allocation2 + $0x18] sm:$0xff]
        %v1314 = vld [vmem:[#allocation2 + $0x20] sm:$0xff]
        %v1315 = vld [vmem:[#allocation2 + $0x28] sm:$0xff]
        %v1316 = vld [vmem:[#allocation2 + $0x30] sm:$0xff]
        %v1317 = vld [vmem:[#allocation2 + $0x38] sm:$0xff]
        %v1318 = vld [vmem:[#allocation2 + $0x40] sm:$0xff]
        %v1319 = vld [vmem:[#allocation2 + $0x48] sm:$0xff]
        %v1320 = vld [vmem:[#allocation2 + $0x50] sm:$0xff]
        %v1321 = vld [vmem:[#allocation2 + $0x58] sm:$0xff]
        %v1322 = vld [vmem:[#allocation2 + $0x60] sm:$0xff]
        %v1323 = vld [vmem:[#allocation2 + $0x68] sm:$0xff]
        %v1324 = vld [vmem:[#allocation2 + $0x70] sm:$0xff]
        %v1325 = vld [vmem:[#allocation2 + $0x78] sm:$0xff]
        %v1326 = vld [vmem:[#allocation2 + $0x80] sm:$0xff]
        %v1327 = vld [vmem:[#allocation2 + $0x88] sm:$0xff]
        %v1328 = vld [vmem:[#allocation2 + $0x90] sm:$0xff]
        %v1329 = vld [vmem:[#allocation2 + $0x98] sm:$0xff]
        %v1330 = vld [vmem:[#allocation2 + $0xa0] sm:$0xff]
        %v1331 = vld [vmem:[#allocation2 + $0xa8] sm:$0xff]
        %v1332 = vld [vmem:[#allocation2 + $0xb0] sm:$0xff]
        %v1333 = vld [vmem:[#allocation2 + $0xb8] sm:$0xff]
        %v1334 = vld [vmem:[#allocation2 + $0xc0] sm:$0xff]
        %v1335 = vld [vmem:[#allocation2 + $0xc8] sm:$0xff]
        %v1336 = vld [vmem:[#allocation2 + $0xd0] sm:$0xff]
        %v1337 = vld [vmem:[#allocation2 + $0xd8] sm:$0xff]
        %v1338 = vld [vmem:[#allocation2 + $0xe0] sm:$0xff]
        %v1339 = vld [vmem:[#allocation2 + $0xe8] sm:$0xff]
        %v1340 = vld [vmem:[#allocation2 + $0xf0] sm:$0xff]
        %v1341 = vld [vmem:[#allocation2 + $0xf8] sm:$0xff]
        %s1342 = scalar_lea.vmem %s2, 8
        %v1343 = vld [vmem:[%s1342] sm:$0xf]
        %v1344 = vld [vmem:[%s1342 + $0x4] sm:$0x3]
        %v1345 = vunpack.c.l.b16 %v939
        %v1346 = vunpack.c.l.b16 %v949
        %v1347 = vunpack.c.l.b16 %v963
        %v1348 = vunpack.c.l.b16 %v973
        %v1349 = vunpack.c.l.b16 %v987
        %v1350 = vunpack.c.l.b16 %v997
        %v1351 = vunpack.c.l.b16 %v1011
        %v1352 = vunpack.c.l.b16 %v1021
        %v1353 = vunpack.c.l.b16 %v1035
        %v1354 = vunpack.c.l.b16 %v1045
        %v1355 = vunpack.c.l.b16 %v1059
        %v1356 = vunpack.c.l.b16 %v1069
        %v1357 = vunpack.c.l.b16 %v1083
        %v1358 = vunpack.c.l.b16 %v1093
        %v1359 = vunpack.c.l.b16 %v1107
        %v1360 = vunpack.c.l.b16 %v1117
        %v1361 = vunpack.c.l.b16 %v1131
        %v1362 = vunpack.c.l.b16 %v1141
        %v1363 = vunpack.c.l.b16 %v1155
        %v1364 = vunpack.c.l.b16 %v1165
        %v1365 = vunpack.c.l.b16 %v1179
        %v1366 = vunpack.c.l.b16 %v1189
        %v1367 = vunpack.c.l.b16 %v1203
        %v1368 = vunpack.c.l.b16 %v1213
        %v1369 = vunpack.c.l.b16 %v1227
        %v1370 = vunpack.c.l.b16 %v1237
        %v1371 = vunpack.c.l.b16 %v1251
        %v1372 = vunpack.c.l.b16 %v1261
        %v1373 = vunpack.c.l.b16 %v1275
        %v1374 = vunpack.c.l.b16 %v1285
        %v1375 = vunpack.c.l.b16 %v1299
        %v1376 = vunpack.c.l.b16 %v1309
        %v1377 = vpack.c.b16 %v1346, %v1345
        %v1378 = vpack.c.b16 %v1348, %v1347
        %v1379 = vpack.c.b16 %v1350, %v1349
        %v1380 = vpack.c.b16 %v1352, %v1351
        %v1381 = vpack.c.b16 %v1354, %v1353
        %v1382 = vpack.c.b16 %v1356, %v1355
        %v1383 = vpack.c.b16 %v1358, %v1357
        %v1384 = vpack.c.b16 %v1360, %v1359
        %v1385 = vpack.c.b16 %v1362, %v1361
        %v1386 = vpack.c.b16 %v1364, %v1363
        %v1387 = vpack.c.b16 %v1366, %v1365
        %v1388 = vpack.c.b16 %v1368, %v1367
        %v1389 = vpack.c.b16 %v1370, %v1369
        %v1390 = vpack.c.b16 %v1372, %v1371
        %v1391 = vpack.c.b16 %v1374, %v1373
        %v1392 = vpack.c.b16 %v1376, %v1375
        %v1395 = vunpack.c.l.b16 %v1343
        %v1396 = vunpack.c.l.b16 %v1344
        %v1397 = vpack.c.b16 %v1396, %v1395
        %v1399 = vsel %vm669, %v1377, 0
        %v1402 = vsel %vm669, %v1378, 0
        %v1405 = vsel %vm669, %v1379, 0
        %v1408 = vsel %vm669, %v1380, 0
        %v1411 = vsel %vm669, %v1381, 0
        %v1414 = vsel %vm669, %v1382, 0
        %v1417 = vsel %vm669, %v1383, 0
        %v1420 = vsel %vm669, %v1384, 0
        %v1423 = vsel %vm669, %v1385, 0
        %v1426 = vsel %vm669, %v1386, 0
        %v1429 = vsel %vm669, %v1387, 0
        %v1432 = vsel %vm669, %v1388, 0
        %v1435 = vsel %vm669, %v1389, 0
        %v1438 = vsel %vm669, %v1390, 0
        %v1441 = vsel %vm669, %v1391, 0
        %v1444 = vsel %vm669, %v1392, 0
        %v1447 = vsel %vm718, %v1397, 0
        %1449 = vmatpush.bf16.msra.mxu0 0
        %1450 = vmatpush.bf16.msra.mxu0 0
        %1451 = vmatpush.bf16.msra.mxu0 0
        %1452 = vmatpush.bf16.msra.mxu0 0
        %1453 = vmatpush.bf16.msra.mxu0 0
        %1454 = vmatpush.bf16.msra.mxu0 0
        %1455 = vmatpush.bf16.msra.mxu0 0
        %1456 = vmatpush.bf16.msra.mxu0 %v1447
        %1457 = vmatmul.bf16.gmra.mxu0 %v1399
        %v1458 = vpop.f32.mrf.mxu0
        %v1459 = vadd.f32 0.0, %v1458
        %v1460 = vpop.f32.mrf.mxu0
        %v1461 = vadd.f32 0.0, %v1460
        %1462 = vmatmul.bf16.gmra.mxu0 %v1402
        %v1463 = vpop.f32.mrf.mxu0
        %v1464 = vadd.f32 0.0, %v1463
        %v1465 = vpop.f32.mrf.mxu0
        %v1466 = vadd.f32 0.0, %v1465
        %1467 = vmatmul.bf16.gmra.mxu0 %v1405
        %v1468 = vpop.f32.mrf.mxu0
        %v1469 = vadd.f32 0.0, %v1468
        %v1470 = vpop.f32.mrf.mxu0
        %v1471 = vadd.f32 0.0, %v1470
        %1472 = vmatmul.bf16.gmra.mxu0 %v1408
        %v1473 = vpop.f32.mrf.mxu0
        %v1474 = vadd.f32 0.0, %v1473
        %v1475 = vpop.f32.mrf.mxu0
        %v1476 = vadd.f32 0.0, %v1475
        %1477 = vmatmul.bf16.gmra.mxu0 %v1411
        %v1478 = vpop.f32.mrf.mxu0
        %v1479 = vadd.f32 0.0, %v1478
        %v1480 = vpop.f32.mrf.mxu0
        %v1481 = vadd.f32 0.0, %v1480
        %1482 = vmatmul.bf16.gmra.mxu0 %v1414
        %v1483 = vpop.f32.mrf.mxu0
        %v1484 = vadd.f32 0.0, %v1483
        %v1485 = vpop.f32.mrf.mxu0
        %v1486 = vadd.f32 0.0, %v1485
        %1487 = vmatmul.bf16.gmra.mxu0 %v1417
        %v1488 = vpop.f32.mrf.mxu0
        %v1489 = vadd.f32 0.0, %v1488
        %v1490 = vpop.f32.mrf.mxu0
        %v1491 = vadd.f32 0.0, %v1490
        %1492 = vmatmul.bf16.gmra.mxu0 %v1420
        %v1493 = vpop.f32.mrf.mxu0
        %v1494 = vadd.f32 0.0, %v1493
        %v1495 = vpop.f32.mrf.mxu0
        %v1496 = vadd.f32 0.0, %v1495
        %1497 = vmatmul.bf16.gmra.mxu0 %v1423
        %v1498 = vpop.f32.mrf.mxu0
        %v1499 = vadd.f32 0.0, %v1498
        %v1500 = vpop.f32.mrf.mxu0
        %v1501 = vadd.f32 0.0, %v1500
        %1502 = vmatmul.bf16.gmra.mxu0 %v1426
        %v1503 = vpop.f32.mrf.mxu0
        %v1504 = vadd.f32 0.0, %v1503
        %v1505 = vpop.f32.mrf.mxu0
        %v1506 = vadd.f32 0.0, %v1505
        %1507 = vmatmul.bf16.gmra.mxu0 %v1429
        %v1508 = vpop.f32.mrf.mxu0
        %v1509 = vadd.f32 0.0, %v1508
        %v1510 = vpop.f32.mrf.mxu0
        %v1511 = vadd.f32 0.0, %v1510
        %1512 = vmatmul.bf16.gmra.mxu0 %v1432
        %v1513 = vpop.f32.mrf.mxu0
        %v1514 = vadd.f32 0.0, %v1513
        %v1515 = vpop.f32.mrf.mxu0
        %v1516 = vadd.f32 0.0, %v1515
        %1517 = vmatmul.bf16.gmra.mxu0 %v1435
        %v1518 = vpop.f32.mrf.mxu0
        %v1519 = vadd.f32 0.0, %v1518
        %v1520 = vpop.f32.mrf.mxu0
        %v1521 = vadd.f32 0.0, %v1520
        %1522 = vmatmul.bf16.gmra.mxu0 %v1438
        %v1523 = vpop.f32.mrf.mxu0
        %v1524 = vadd.f32 0.0, %v1523
        %v1525 = vpop.f32.mrf.mxu0
        %v1526 = vadd.f32 0.0, %v1525
        %1527 = vmatmul.bf16.gmra.mxu0 %v1441
        %v1528 = vpop.f32.mrf.mxu0
        %v1529 = vadd.f32 0.0, %v1528
        %v1530 = vpop.f32.mrf.mxu0
        %v1531 = vadd.f32 0.0, %v1530
        %1532 = vmatmul.bf16.gmra.mxu0 %v1444
        %v1533 = vpop.f32.mrf.mxu0
        %v1534 = vadd.f32 0.0, %v1533
        %v1535 = vpop.f32.mrf.mxu0
        %v1536 = vadd.f32 0.0, %v1535
        %1537 = vdwg.mxu0
        %v1538 = vadd.f32 %v1310, %v1459
        %v1539 = vadd.f32 %v1311, %v1461
        %v1540 = vadd.f32 %v1312, %v1464
        %v1541 = vadd.f32 %v1313, %v1466
        %v1542 = vadd.f32 %v1314, %v1469
        %v1543 = vadd.f32 %v1315, %v1471
        %v1544 = vadd.f32 %v1316, %v1474
        %v1545 = vadd.f32 %v1317, %v1476
        %v1546 = vadd.f32 %v1318, %v1479
        %v1547 = vadd.f32 %v1319, %v1481
        %v1548 = vadd.f32 %v1320, %v1484
        %v1549 = vadd.f32 %v1321, %v1486
        %v1550 = vadd.f32 %v1322, %v1489
        %v1551 = vadd.f32 %v1323, %v1491
        %v1552 = vadd.f32 %v1324, %v1494
        %v1553 = vadd.f32 %v1325, %v1496
        %v1554 = vadd.f32 %v1326, %v1499
        %v1555 = vadd.f32 %v1327, %v1501
        %v1556 = vadd.f32 %v1328, %v1504
        %v1557 = vadd.f32 %v1329, %v1506
        %v1558 = vadd.f32 %v1330, %v1509
        %v1559 = vadd.f32 %v1331, %v1511
        %v1560 = vadd.f32 %v1332, %v1514
        %v1561 = vadd.f32 %v1333, %v1516
        %v1562 = vadd.f32 %v1334, %v1519
        %v1563 = vadd.f32 %v1335, %v1521
        %v1564 = vadd.f32 %v1336, %v1524
        %v1565 = vadd.f32 %v1337, %v1526
        %v1566 = vadd.f32 %v1338, %v1529
        %v1567 = vadd.f32 %v1339, %v1531
        %v1568 = vadd.f32 %v1340, %v1534
        %v1569 = vadd.f32 %v1341, %v1536
        %1570 = vst.msk [vmem:[#allocation2] sm:$0xff] %vm485, %v1538
        %1571 = vst.msk [vmem:[#allocation2 + $0x8] sm:$0xff] %vm485, %v1539
        %1572 = vst.msk [vmem:[#allocation2 + $0x10] sm:$0xff] %vm485, %v1540
        %1573 = vst.msk [vmem:[#allocation2 + $0x18] sm:$0xff] %vm485, %v1541
        %1574 = vst.msk [vmem:[#allocation2 + $0x20] sm:$0xff] %vm485, %v1542
        %1575 = vst.msk [vmem:[#allocation2 + $0x28] sm:$0xff] %vm485, %v1543
        %1576 = vst.msk [vmem:[#allocation2 + $0x30] sm:$0xff] %vm485, %v1544
        %1577 = vst.msk [vmem:[#allocation2 + $0x38] sm:$0xff] %vm485, %v1545
        %1578 = vst.msk [vmem:[#allocation2 + $0x40] sm:$0xff] %vm485, %v1546
        %1579 = vst.msk [vmem:[#allocation2 + $0x48] sm:$0xff] %vm485, %v1547
        %1580 = vst.msk [vmem:[#allocation2 + $0x50] sm:$0xff] %vm485, %v1548
        %1581 = vst.msk [vmem:[#allocation2 + $0x58] sm:$0xff] %vm485, %v1549
        %1582 = vst.msk [vmem:[#allocation2 + $0x60] sm:$0xff] %vm485, %v1550
        %1583 = vst.msk [vmem:[#allocation2 + $0x68] sm:$0xff] %vm485, %v1551
        %1584 = vst.msk [vmem:[#allocation2 + $0x70] sm:$0xff] %vm485, %v1552
        %1585 = vst.msk [vmem:[#allocation2 + $0x78] sm:$0xff] %vm485, %v1553
        %1586 = vst.msk [vmem:[#allocation2 + $0x80] sm:$0xff] %vm485, %v1554
        %1587 = vst.msk [vmem:[#allocation2 + $0x88] sm:$0xff] %vm485, %v1555
        %1588 = vst.msk [vmem:[#allocation2 + $0x90] sm:$0xff] %vm485, %v1556
        %1589 = vst.msk [vmem:[#allocation2 + $0x98] sm:$0xff] %vm485, %v1557
        %1590 = vst.msk [vmem:[#allocation2 + $0xa0] sm:$0xff] %vm485, %v1558
        %1591 = vst.msk [vmem:[#allocation2 + $0xa8] sm:$0xff] %vm485, %v1559
        %1592 = vst.msk [vmem:[#allocation2 + $0xb0] sm:$0xff] %vm485, %v1560
        %1593 = vst.msk [vmem:[#allocation2 + $0xb8] sm:$0xff] %vm485, %v1561
        %1594 = vst.msk [vmem:[#allocation2 + $0xc0] sm:$0xff] %vm485, %v1562
        %1595 = vst.msk [vmem:[#allocation2 + $0xc8] sm:$0xff] %vm485, %v1563
        %1596 = vst.msk [vmem:[#allocation2 + $0xd0] sm:$0xff] %vm485, %v1564
        %1597 = vst.msk [vmem:[#allocation2 + $0xd8] sm:$0xff] %vm485, %v1565
        %1598 = vst.msk [vmem:[#allocation2 + $0xe0] sm:$0xff] %vm485, %v1566
        %1599 = vst.msk [vmem:[#allocation2 + $0xe8] sm:$0xff] %vm485, %v1567
        %1600 = vst.msk [vmem:[#allocation2 + $0xf0] sm:$0xff] %vm485, %v1568
        %1601 = vst.msk [vmem:[#allocation2 + $0xf8] sm:$0xff] %vm485, %v1569
        %s1602 = scalar_lea.vmem [#allocation3], 12
        %v1603 = vld [vmem:[%s1602] sm:$0xf]
        %v1604 = vld [vmem:[%s1602 + $0x4] sm:$0xf]
        %v1605 = vld [vmem:[%s1602 + $0xc] sm:$0xf]
        %v1606 = vld [vmem:[%s1602 + $0x10] sm:$0xf]
        %v1607 = vld [vmem:[%s1602 + $0x18] sm:$0xf]
        %v1608 = vld [vmem:[%s1602 + $0x1c] sm:$0xf]
        %v1609 = vld [vmem:[%s1602 + $0x24] sm:$0xf]
        %v1610 = vld [vmem:[%s1602 + $0x28] sm:$0xf]
        %v1611 = vld [vmem:[%s1602 + $0x30] sm:$0xf]
        %v1612 = vld [vmem:[%s1602 + $0x34] sm:$0xf]
        %v1613 = vld [vmem:[%s1602 + $0x3c] sm:$0xf]
        %v1614 = vld [vmem:[%s1602 + $0x40] sm:$0xf]
        %v1615 = vld [vmem:[%s1602 + $0x48] sm:$0xf]
        %v1616 = vld [vmem:[%s1602 + $0x4c] sm:$0xf]
        %v1617 = vld [vmem:[%s1602 + $0x54] sm:$0xf]
        %v1618 = vld [vmem:[%s1602 + $0x58] sm:$0xf]
        %v1619 = vld [vmem:[%s1602 + $0x60] sm:$0xf]
        %v1620 = vld [vmem:[%s1602 + $0x64] sm:$0xf]
        %v1621 = vld [vmem:[%s1602 + $0x6c] sm:$0xf]
        %v1622 = vld [vmem:[%s1602 + $0x70] sm:$0xf]
        %v1623 = vld [vmem:[%s1602 + $0x78] sm:$0xf]
        %v1624 = vld [vmem:[%s1602 + $0x7c] sm:$0xf]
        %v1625 = vld [vmem:[%s1602 + $0x84] sm:$0xf]
        %v1626 = vld [vmem:[%s1602 + $0x88] sm:$0xf]
        %v1627 = vld [vmem:[%s1602 + $0x90] sm:$0xf]
        %v1628 = vld [vmem:[%s1602 + $0x94] sm:$0xf]
        %v1629 = vld [vmem:[%s1602 + $0x9c] sm:$0xf]
        %v1630 = vld [vmem:[%s1602 + $0xa0] sm:$0xf]
        %v1631 = vld [vmem:[%s1602 + $0xa8] sm:$0xf]
        %v1632 = vld [vmem:[%s1602 + $0xac] sm:$0xf]
        %v1633 = vld [vmem:[%s1602 + $0xb4] sm:$0xf]
        %v1634 = vld [vmem:[%s1602 + $0xb8] sm:$0xf]
        %v1635 = vld [vmem:[#allocation2] sm:$0xff]
        %v1636 = vld [vmem:[#allocation2 + $0x8] sm:$0xff]
        %v1637 = vld [vmem:[#allocation2 + $0x10] sm:$0xff]
        %v1638 = vld [vmem:[#allocation2 + $0x18] sm:$0xff]
        %v1639 = vld [vmem:[#allocation2 + $0x20] sm:$0xff]
        %v1640 = vld [vmem:[#allocation2 + $0x28] sm:$0xff]
        %v1641 = vld [vmem:[#allocation2 + $0x30] sm:$0xff]
        %v1642 = vld [vmem:[#allocation2 + $0x38] sm:$0xff]
        %v1643 = vld [vmem:[#allocation2 + $0x40] sm:$0xff]
        %v1644 = vld [vmem:[#allocation2 + $0x48] sm:$0xff]
        %v1645 = vld [vmem:[#allocation2 + $0x50] sm:$0xff]
        %v1646 = vld [vmem:[#allocation2 + $0x58] sm:$0xff]
        %v1647 = vld [vmem:[#allocation2 + $0x60] sm:$0xff]
        %v1648 = vld [vmem:[#allocation2 + $0x68] sm:$0xff]
        %v1649 = vld [vmem:[#allocation2 + $0x70] sm:$0xff]
        %v1650 = vld [vmem:[#allocation2 + $0x78] sm:$0xff]
        %v1651 = vld [vmem:[#allocation2 + $0x80] sm:$0xff]
        %v1652 = vld [vmem:[#allocation2 + $0x88] sm:$0xff]
        %v1653 = vld [vmem:[#allocation2 + $0x90] sm:$0xff]
        %v1654 = vld [vmem:[#allocation2 + $0x98] sm:$0xff]
        %v1655 = vld [vmem:[#allocation2 + $0xa0] sm:$0xff]
        %v1656 = vld [vmem:[#allocation2 + $0xa8] sm:$0xff]
        %v1657 = vld [vmem:[#allocation2 + $0xb0] sm:$0xff]
        %v1658 = vld [vmem:[#allocation2 + $0xb8] sm:$0xff]
        %v1659 = vld [vmem:[#allocation2 + $0xc0] sm:$0xff]
        %v1660 = vld [vmem:[#allocation2 + $0xc8] sm:$0xff]
        %v1661 = vld [vmem:[#allocation2 + $0xd0] sm:$0xff]
        %v1662 = vld [vmem:[#allocation2 + $0xd8] sm:$0xff]
        %v1663 = vld [vmem:[#allocation2 + $0xe0] sm:$0xff]
        %v1664 = vld [vmem:[#allocation2 + $0xe8] sm:$0xff]
        %v1665 = vld [vmem:[#allocation2 + $0xf0] sm:$0xff]
        %v1666 = vld [vmem:[#allocation2 + $0xf8] sm:$0xff]
        %s1667 = scalar_lea.vmem %s2, 16
        %v1668 = vld [vmem:[%s1667] sm:$0xf]
        %v1669 = vld [vmem:[%s1667 + $0x4] sm:$0x3]
        %v1702 = vunpack.c.l.b16 %v1603
        %v1703 = vunpack.c.l.b16 %v1604
        %v1704 = vunpack.c.l.b16 %v1605
        %v1705 = vunpack.c.l.b16 %v1606
        %v1706 = vunpack.c.l.b16 %v1607
        %v1707 = vunpack.c.l.b16 %v1608
        %v1708 = vunpack.c.l.b16 %v1609
        %v1709 = vunpack.c.l.b16 %v1610
        %v1710 = vunpack.c.l.b16 %v1611
        %v1711 = vunpack.c.l.b16 %v1612
        %v1712 = vunpack.c.l.b16 %v1613
        %v1713 = vunpack.c.l.b16 %v1614
        %v1714 = vunpack.c.l.b16 %v1615
        %v1715 = vunpack.c.l.b16 %v1616
        %v1716 = vunpack.c.l.b16 %v1617
        %v1717 = vunpack.c.l.b16 %v1618
        %v1718 = vunpack.c.l.b16 %v1619
        %v1719 = vunpack.c.l.b16 %v1620
        %v1720 = vunpack.c.l.b16 %v1621
        %v1721 = vunpack.c.l.b16 %v1622
        %v1722 = vunpack.c.l.b16 %v1623
        %v1723 = vunpack.c.l.b16 %v1624
        %v1724 = vunpack.c.l.b16 %v1625
        %v1725 = vunpack.c.l.b16 %v1626
        %v1726 = vunpack.c.l.b16 %v1627
        %v1727 = vunpack.c.l.b16 %v1628
        %v1728 = vunpack.c.l.b16 %v1629
        %v1729 = vunpack.c.l.b16 %v1630
        %v1730 = vunpack.c.l.b16 %v1631
        %v1731 = vunpack.c.l.b16 %v1632
        %v1732 = vunpack.c.l.b16 %v1633
        %v1733 = vunpack.c.l.b16 %v1634
        %v1734 = vpack.c.b16 %v1703, %v1702
        %v1735 = vpack.c.b16 %v1705, %v1704
        %v1736 = vpack.c.b16 %v1707, %v1706
        %v1737 = vpack.c.b16 %v1709, %v1708
        %v1738 = vpack.c.b16 %v1711, %v1710
        %v1739 = vpack.c.b16 %v1713, %v1712
        %v1740 = vpack.c.b16 %v1715, %v1714
        %v1741 = vpack.c.b16 %v1717, %v1716
        %v1742 = vpack.c.b16 %v1719, %v1718
        %v1743 = vpack.c.b16 %v1721, %v1720
        %v1744 = vpack.c.b16 %v1723, %v1722
        %v1745 = vpack.c.b16 %v1725, %v1724
        %v1746 = vpack.c.b16 %v1727, %v1726
        %v1747 = vpack.c.b16 %v1729, %v1728
        %v1748 = vpack.c.b16 %v1731, %v1730
        %v1749 = vpack.c.b16 %v1733, %v1732
        %v1752 = vunpack.c.l.b16 %v1668
        %v1753 = vunpack.c.l.b16 %v1669
        %v1754 = vpack.c.b16 %v1753, %v1752
        %v1756 = vsel %vm669, %v1734, 0
        %v1759 = vsel %vm669, %v1735, 0
        %v1762 = vsel %vm669, %v1736, 0
        %v1765 = vsel %vm669, %v1737, 0
        %v1768 = vsel %vm669, %v1738, 0
        %v1771 = vsel %vm669, %v1739, 0
        %v1774 = vsel %vm669, %v1740, 0
        %v1777 = vsel %vm669, %v1741, 0
        %v1780 = vsel %vm669, %v1742, 0
        %v1783 = vsel %vm669, %v1743, 0
        %v1786 = vsel %vm669, %v1744, 0
        %v1789 = vsel %vm669, %v1745, 0
        %v1792 = vsel %vm669, %v1746, 0
        %v1795 = vsel %vm669, %v1747, 0
        %v1798 = vsel %vm669, %v1748, 0
        %v1801 = vsel %vm669, %v1749, 0
        %v1804 = vsel %vm718, %v1754, 0
        %1806 = vmatpush.bf16.msra.mxu0 0
        %1807 = vmatpush.bf16.msra.mxu0 0
        %1808 = vmatpush.bf16.msra.mxu0 0
        %1809 = vmatpush.bf16.msra.mxu0 0
        %1810 = vmatpush.bf16.msra.mxu0 0
        %1811 = vmatpush.bf16.msra.mxu0 0
        %1812 = vmatpush.bf16.msra.mxu0 0
        %1813 = vmatpush.bf16.msra.mxu0 %v1804
        %1814 = vmatmul.bf16.gmra.mxu0 %v1756
        %v1815 = vpop.f32.mrf.mxu0
        %v1816 = vadd.f32 0.0, %v1815
        %v1817 = vpop.f32.mrf.mxu0
        %v1818 = vadd.f32 0.0, %v1817
        %1819 = vmatmul.bf16.gmra.mxu0 %v1759
        %v1820 = vpop.f32.mrf.mxu0
        %v1821 = vadd.f32 0.0, %v1820
        %v1822 = vpop.f32.mrf.mxu0
        %v1823 = vadd.f32 0.0, %v1822
        %1824 = vmatmul.bf16.gmra.mxu0 %v1762
        %v1825 = vpop.f32.mrf.mxu0
        %v1826 = vadd.f32 0.0, %v1825
        %v1827 = vpop.f32.mrf.mxu0
        %v1828 = vadd.f32 0.0, %v1827
        %1829 = vmatmul.bf16.gmra.mxu0 %v1765
        %v1830 = vpop.f32.mrf.mxu0
        %v1831 = vadd.f32 0.0, %v1830
        %v1832 = vpop.f32.mrf.mxu0
        %v1833 = vadd.f32 0.0, %v1832
        %1834 = vmatmul.bf16.gmra.mxu0 %v1768
        %v1835 = vpop.f32.mrf.mxu0
        %v1836 = vadd.f32 0.0, %v1835
        %v1837 = vpop.f32.mrf.mxu0
        %v1838 = vadd.f32 0.0, %v1837
        %1839 = vmatmul.bf16.gmra.mxu0 %v1771
        %v1840 = vpop.f32.mrf.mxu0
        %v1841 = vadd.f32 0.0, %v1840
        %v1842 = vpop.f32.mrf.mxu0
        %v1843 = vadd.f32 0.0, %v1842
        %1844 = vmatmul.bf16.gmra.mxu0 %v1774
        %v1845 = vpop.f32.mrf.mxu0
        %v1846 = vadd.f32 0.0, %v1845
        %v1847 = vpop.f32.mrf.mxu0
        %v1848 = vadd.f32 0.0, %v1847
        %1849 = vmatmul.bf16.gmra.mxu0 %v1777
        %v1850 = vpop.f32.mrf.mxu0
        %v1851 = vadd.f32 0.0, %v1850
        %v1852 = vpop.f32.mrf.mxu0
        %v1853 = vadd.f32 0.0, %v1852
        %1854 = vmatmul.bf16.gmra.mxu0 %v1780
        %v1855 = vpop.f32.mrf.mxu0
        %v1856 = vadd.f32 0.0, %v1855
        %v1857 = vpop.f32.mrf.mxu0
        %v1858 = vadd.f32 0.0, %v1857
        %1859 = vmatmul.bf16.gmra.mxu0 %v1783
        %v1860 = vpop.f32.mrf.mxu0
        %v1861 = vadd.f32 0.0, %v1860
        %v1862 = vpop.f32.mrf.mxu0
        %v1863 = vadd.f32 0.0, %v1862
        %1864 = vmatmul.bf16.gmra.mxu0 %v1786
        %v1865 = vpop.f32.mrf.mxu0
        %v1866 = vadd.f32 0.0, %v1865
        %v1867 = vpop.f32.mrf.mxu0
        %v1868 = vadd.f32 0.0, %v1867
        %1869 = vmatmul.bf16.gmra.mxu0 %v1789
        %v1870 = vpop.f32.mrf.mxu0
        %v1871 = vadd.f32 0.0, %v1870
        %v1872 = vpop.f32.mrf.mxu0
        %v1873 = vadd.f32 0.0, %v1872
        %1874 = vmatmul.bf16.gmra.mxu0 %v1792
        %v1875 = vpop.f32.mrf.mxu0
        %v1876 = vadd.f32 0.0, %v1875
        %v1877 = vpop.f32.mrf.mxu0
        %v1878 = vadd.f32 0.0, %v1877
        %1879 = vmatmul.bf16.gmra.mxu0 %v1795
        %v1880 = vpop.f32.mrf.mxu0
        %v1881 = vadd.f32 0.0, %v1880
        %v1882 = vpop.f32.mrf.mxu0
        %v1883 = vadd.f32 0.0, %v1882
        %1884 = vmatmul.bf16.gmra.mxu0 %v1798
        %v1885 = vpop.f32.mrf.mxu0
        %v1886 = vadd.f32 0.0, %v1885
        %v1887 = vpop.f32.mrf.mxu0
        %v1888 = vadd.f32 0.0, %v1887
        %1889 = vmatmul.bf16.gmra.mxu0 %v1801
        %v1890 = vpop.f32.mrf.mxu0
        %v1891 = vadd.f32 0.0, %v1890
        %v1892 = vpop.f32.mrf.mxu0
        %v1893 = vadd.f32 0.0, %v1892
        %1894 = vdwg.mxu0
        %v1895 = vadd.f32 %v1635, %v1816
        %v1896 = vadd.f32 %v1636, %v1818
        %v1897 = vadd.f32 %v1637, %v1821
        %v1898 = vadd.f32 %v1638, %v1823
        %v1899 = vadd.f32 %v1639, %v1826
        %v1900 = vadd.f32 %v1640, %v1828
        %v1901 = vadd.f32 %v1641, %v1831
        %v1902 = vadd.f32 %v1642, %v1833
        %v1903 = vadd.f32 %v1643, %v1836
        %v1904 = vadd.f32 %v1644, %v1838
        %v1905 = vadd.f32 %v1645, %v1841
        %v1906 = vadd.f32 %v1646, %v1843
        %v1907 = vadd.f32 %v1647, %v1846
        %v1908 = vadd.f32 %v1648, %v1848
        %v1909 = vadd.f32 %v1649, %v1851
        %v1910 = vadd.f32 %v1650, %v1853
        %v1911 = vadd.f32 %v1651, %v1856
        %v1912 = vadd.f32 %v1652, %v1858
        %v1913 = vadd.f32 %v1653, %v1861
        %v1914 = vadd.f32 %v1654, %v1863
        %v1915 = vadd.f32 %v1655, %v1866
        %v1916 = vadd.f32 %v1656, %v1868
        %v1917 = vadd.f32 %v1657, %v1871
        %v1918 = vadd.f32 %v1658, %v1873
        %v1919 = vadd.f32 %v1659, %v1876
        %v1920 = vadd.f32 %v1660, %v1878
        %v1921 = vadd.f32 %v1661, %v1881
        %v1922 = vadd.f32 %v1662, %v1883
        %v1923 = vadd.f32 %v1663, %v1886
        %v1924 = vadd.f32 %v1664, %v1888
        %v1925 = vadd.f32 %v1665, %v1891
        %v1926 = vadd.f32 %v1666, %v1893
        %1927 = vst.msk [vmem:[#allocation2] sm:$0xff] %vm485, %v1895
        %1928 = vst.msk [vmem:[#allocation2 + $0x8] sm:$0xff] %vm485, %v1896
        %1929 = vst.msk [vmem:[#allocation2 + $0x10] sm:$0xff] %vm485, %v1897
        %1930 = vst.msk [vmem:[#allocation2 + $0x18] sm:$0xff] %vm485, %v1898
        %1931 = vst.msk [vmem:[#allocation2 + $0x20] sm:$0xff] %vm485, %v1899
        %1932 = vst.msk [vmem:[#allocation2 + $0x28] sm:$0xff] %vm485, %v1900
        %1933 = vst.msk [vmem:[#allocation2 + $0x30] sm:$0xff] %vm485, %v1901
        %1934 = vst.msk [vmem:[#allocation2 + $0x38] sm:$0xff] %vm485, %v1902
        %1935 = vst.msk [vmem:[#allocation2 + $0x40] sm:$0xff] %vm485, %v1903
        %1936 = vst.msk [vmem:[#allocation2 + $0x48] sm:$0xff] %vm485, %v1904
        %1937 = vst.msk [vmem:[#allocation2 + $0x50] sm:$0xff] %vm485, %v1905
        %1938 = vst.msk [vmem:[#allocation2 + $0x58] sm:$0xff] %vm485, %v1906
        %1939 = vst.msk [vmem:[#allocation2 + $0x60] sm:$0xff] %vm485, %v1907
        %1940 = vst.msk [vmem:[#allocation2 + $0x68] sm:$0xff] %vm485, %v1908
        %1941 = vst.msk [vmem:[#allocation2 + $0x70] sm:$0xff] %vm485, %v1909
        %1942 = vst.msk [vmem:[#allocation2 + $0x78] sm:$0xff] %vm485, %v1910
        %1943 = vst.msk [vmem:[#allocation2 + $0x80] sm:$0xff] %vm485, %v1911
        %1944 = vst.msk [vmem:[#allocation2 + $0x88] sm:$0xff] %vm485, %v1912
        %1945 = vst.msk [vmem:[#allocation2 + $0x90] sm:$0xff] %vm485, %v1913
        %1946 = vst.msk [vmem:[#allocation2 + $0x98] sm:$0xff] %vm485, %v1914
        %1947 = vst.msk [vmem:[#allocation2 + $0xa0] sm:$0xff] %vm485, %v1915
        %1948 = vst.msk [vmem:[#allocation2 + $0xa8] sm:$0xff] %vm485, %v1916
        %1949 = vst.msk [vmem:[#allocation2 + $0xb0] sm:$0xff] %vm485, %v1917
        %1950 = vst.msk [vmem:[#allocation2 + $0xb8] sm:$0xff] %vm485, %v1918
        %1951 = vst.msk [vmem:[#allocation2 + $0xc0] sm:$0xff] %vm485, %v1919
        %1952 = vst.msk [vmem:[#allocation2 + $0xc8] sm:$0xff] %vm485, %v1920
        %1953 = vst.msk [vmem:[#allocation2 + $0xd0] sm:$0xff] %vm485, %v1921
        %1954 = vst.msk [vmem:[#allocation2 + $0xd8] sm:$0xff] %vm485, %v1922
        %1955 = vst.msk [vmem:[#allocation2 + $0xe0] sm:$0xff] %vm485, %v1923
        %1956 = vst.msk [vmem:[#allocation2 + $0xe8] sm:$0xff] %vm485, %v1924
        %1957 = vst.msk [vmem:[#allocation2 + $0xf0] sm:$0xff] %vm485, %v1925
        %1958 = vst.msk [vmem:[#allocation2 + $0xf8] sm:$0xff] %vm485, %v1926
        %v1959 = vld [vmem:[%s1602] sm:$0xf]
        %v1960 = vld [vmem:[%s1602 + $0x4] sm:$0xf]
        %v1961 = vld [vmem:[%s1602 + $0x8] sm:$0x1]
        %v1962 = vld [vmem:[%s1602 + $0xc] sm:$0xf]
        %v1963 = vld [vmem:[%s1602 + $0x10] sm:$0xf]
        %v1964 = vld [vmem:[%s1602 + $0x14] sm:$0x1]
        %v1965 = vld [vmem:[%s1602 + $0x18] sm:$0xf]
        %v1966 = vld [vmem:[%s1602 + $0x1c] sm:$0xf]
        %v1967 = vld [vmem:[%s1602 + $0x20] sm:$0x1]
        %v1968 = vld [vmem:[%s1602 + $0x24] sm:$0xf]
        %v1969 = vld [vmem:[%s1602 + $0x28] sm:$0xf]
        %v1970 = vld [vmem:[%s1602 + $0x2c] sm:$0x1]
        %v1971 = vld [vmem:[%s1602 + $0x30] sm:$0xf]
        %v1972 = vld [vmem:[%s1602 + $0x34] sm:$0xf]
        %v1973 = vld [vmem:[%s1602 + $0x38] sm:$0x1]
        %v1974 = vld [vmem:[%s1602 + $0x3c] sm:$0xf]
        %v1975 = vld [vmem:[%s1602 + $0x40] sm:$0xf]
        %v1976 = vld [vmem:[%s1602 + $0x44] sm:$0x1]
        %v1977 = vld [vmem:[%s1602 + $0x48] sm:$0xf]
        %v1978 = vld [vmem:[%s1602 + $0x4c] sm:$0xf]
        %v1979 = vld [vmem:[%s1602 + $0x50] sm:$0x1]
        %v1980 = vld [vmem:[%s1602 + $0x54] sm:$0xf]
        %v1981 = vld [vmem:[%s1602 + $0x58] sm:$0xf]
        %v1982 = vld [vmem:[%s1602 + $0x5c] sm:$0x1]
        %v1983 = vld [vmem:[%s1602 + $0x60] sm:$0xf]
        %v1984 = vld [vmem:[%s1602 + $0x64] sm:$0xf]
        %v1985 = vld [vmem:[%s1602 + $0x68] sm:$0x1]
        %v1986 = vld [vmem:[%s1602 + $0x6c] sm:$0xf]
        %v1987 = vld [vmem:[%s1602 + $0x70] sm:$0xf]
        %v1988 = vld [vmem:[%s1602 + $0x74] sm:$0x1]
        %v1989 = vld [vmem:[%s1602 + $0x78] sm:$0xf]
        %v1990 = vld [vmem:[%s1602 + $0x7c] sm:$0xf]
        %v1991 = vld [vmem:[%s1602 + $0x80] sm:$0x1]
        %v1992 = vld [vmem:[%s1602 + $0x84] sm:$0xf]
        %v1993 = vld [vmem:[%s1602 + $0x88] sm:$0xf]
        %v1994 = vld [vmem:[%s1602 + $0x8c] sm:$0x1]
        %v1995 = vld [vmem:[%s1602 + $0x90] sm:$0xf]
        %v1996 = vld [vmem:[%s1602 + $0x94] sm:$0xf]
        %v1997 = vld [vmem:[%s1602 + $0x98] sm:$0x1]
        %v1998 = vld [vmem:[%s1602 + $0x9c] sm:$0xf]
        %v1999 = vld [vmem:[%s1602 + $0xa0] sm:$0xf]
        %v2000 = vld [vmem:[%s1602 + $0xa4] sm:$0x1]
        %v2001 = vld [vmem:[%s1602 + $0xa8] sm:$0xf]
        %v2002 = vld [vmem:[%s1602 + $0xac] sm:$0xf]
        %v2003 = vld [vmem:[%s1602 + $0xb0] sm:$0x1]
        %v2004 = vld [vmem:[%s1602 + $0xb4] sm:$0xf]
        %v2005 = vld [vmem:[%s1602 + $0xb8] sm:$0xf]
        %v2006 = vld [vmem:[%s1602 + $0xbc] sm:$0x1]
        %v2008 = vshrl.u32 %v1959, 16
        %v2010 = vrot.slane %v2008, 4
        %v2011 = vshll.u32 %v1959, 16
        %v2013 = vrot.slane %v2011, 5
        %v2014 = vor.u32 %v2010, %v2013
        %v2015 = vrot.slane %v2014, 4
        %v2017 = vshll.u32 %v1960, 16
        %v2019 = vrot.slane %v2017, 5
        %v2020 = vsel %vm925, %v2015, %v2019
        %v2021 = vshrl.u32 %v1960, 16
        %v2023 = vrot.slane %v2021, 4
        %v2024 = vor.u32 %v2023, %v2019
        %v2025 = vrot.slane %v2024, 4
        %v2027 = vshll.u32 %v1961, 16
        %v2029 = vrot.slane %v2027, 5
        %v2030 = vsel %vm925, %v2025, %v2029
        %v2032 = vshrl.u32 %v1962, 16
        %v2034 = vrot.slane %v2032, 4
        %v2035 = vshll.u32 %v1962, 16
        %v2037 = vrot.slane %v2035, 5
        %v2038 = vor.u32 %v2034, %v2037
        %v2039 = vrot.slane %v2038, 4
        %v2041 = vshll.u32 %v1963, 16
        %v2043 = vrot.slane %v2041, 5
        %v2044 = vsel %vm925, %v2039, %v2043
        %v2045 = vshrl.u32 %v1963, 16
        %v2047 = vrot.slane %v2045, 4
        %v2048 = vor.u32 %v2047, %v2043
        %v2049 = vrot.slane %v2048, 4
        %v2051 = vshll.u32 %v1964, 16
        %v2053 = vrot.slane %v2051, 5
        %v2054 = vsel %vm925, %v2049, %v2053
        %v2056 = vshrl.u32 %v1965, 16
        %v2058 = vrot.slane %v2056, 4
        %v2059 = vshll.u32 %v1965, 16
        %v2061 = vrot.slane %v2059, 5
        %v2062 = vor.u32 %v2058, %v2061
        %v2063 = vrot.slane %v2062, 4
        %v2065 = vshll.u32 %v1966, 16
        %v2067 = vrot.slane %v2065, 5
        %v2068 = vsel %vm925, %v2063, %v2067
        %v2069 = vshrl.u32 %v1966, 16
        %v2071 = vrot.slane %v2069, 4
        %v2072 = vor.u32 %v2071, %v2067
        %v2073 = vrot.slane %v2072, 4
        %v2075 = vshll.u32 %v1967, 16
        %v2077 = vrot.slane %v2075, 5
        %v2078 = vsel %vm925, %v2073, %v2077
        %v2080 = vshrl.u32 %v1968, 16
        %v2082 = vrot.slane %v2080, 4
        %v2083 = vshll.u32 %v1968, 16
        %v2085 = vrot.slane %v2083, 5
        %v2086 = vor.u32 %v2082, %v2085
        %v2087 = vrot.slane %v2086, 4
        %v2089 = vshll.u32 %v1969, 16
        %v2091 = vrot.slane %v2089, 5
        %v2092 = vsel %vm925, %v2087, %v2091
        %v2093 = vshrl.u32 %v1969, 16
        %v2095 = vrot.slane %v2093, 4
        %v2096 = vor.u32 %v2095, %v2091
        %v2097 = vrot.slane %v2096, 4
        %v2099 = vshll.u32 %v1970, 16
        %v2101 = vrot.slane %v2099, 5
        %v2102 = vsel %vm925, %v2097, %v2101
        %v2104 = vshrl.u32 %v1971, 16
        %v2106 = vrot.slane %v2104, 4
        %v2107 = vshll.u32 %v1971, 16
        %v2109 = vrot.slane %v2107, 5
        %v2110 = vor.u32 %v2106, %v2109
        %v2111 = vrot.slane %v2110, 4
        %v2113 = vshll.u32 %v1972, 16
        %v2115 = vrot.slane %v2113, 5
        %v2116 = vsel %vm925, %v2111, %v2115
        %v2117 = vshrl.u32 %v1972, 16
        %v2119 = vrot.slane %v2117, 4
        %v2120 = vor.u32 %v2119, %v2115
        %v2121 = vrot.slane %v2120, 4
        %v2123 = vshll.u32 %v1973, 16
        %v2125 = vrot.slane %v2123, 5
        %v2126 = vsel %vm925, %v2121, %v2125
        %v2128 = vshrl.u32 %v1974, 16
        %v2130 = vrot.slane %v2128, 4
        %v2131 = vshll.u32 %v1974, 16
        %v2133 = vrot.slane %v2131, 5
        %v2134 = vor.u32 %v2130, %v2133
        %v2135 = vrot.slane %v2134, 4
        %v2137 = vshll.u32 %v1975, 16
        %v2139 = vrot.slane %v2137, 5
        %v2140 = vsel %vm925, %v2135, %v2139
        %v2141 = vshrl.u32 %v1975, 16
        %v2143 = vrot.slane %v2141, 4
        %v2144 = vor.u32 %v2143, %v2139
        %v2145 = vrot.slane %v2144, 4
        %v2147 = vshll.u32 %v1976, 16
        %v2149 = vrot.slane %v2147, 5
        %v2150 = vsel %vm925, %v2145, %v2149
        %v2152 = vshrl.u32 %v1977, 16
        %v2154 = vrot.slane %v2152, 4
        %v2155 = vshll.u32 %v1977, 16
        %v2157 = vrot.slane %v2155, 5
        %v2158 = vor.u32 %v2154, %v2157
        %v2159 = vrot.slane %v2158, 4
        %v2161 = vshll.u32 %v1978, 16
        %v2163 = vrot.slane %v2161, 5
        %v2164 = vsel %vm925, %v2159, %v2163
        %v2165 = vshrl.u32 %v1978, 16
        %v2167 = vrot.slane %v2165, 4
        %v2168 = vor.u32 %v2167, %v2163
        %v2169 = vrot.slane %v2168, 4
        %v2171 = vshll.u32 %v1979, 16
        %v2173 = vrot.slane %v2171, 5
        %v2174 = vsel %vm925, %v2169, %v2173
        %v2176 = vshrl.u32 %v1980, 16
        %v2178 = vrot.slane %v2176, 4
        %v2179 = vshll.u32 %v1980, 16
        %v2181 = vrot.slane %v2179, 5
        %v2182 = vor.u32 %v2178, %v2181
        %v2183 = vrot.slane %v2182, 4
        %v2185 = vshll.u32 %v1981, 16
        %v2187 = vrot.slane %v2185, 5
        %v2188 = vsel %vm925, %v2183, %v2187
        %v2189 = vshrl.u32 %v1981, 16
        %v2191 = vrot.slane %v2189, 4
        %v2192 = vor.u32 %v2191, %v2187
        %v2193 = vrot.slane %v2192, 4
        %v2195 = vshll.u32 %v1982, 16
        %v2197 = vrot.slane %v2195, 5
        %v2198 = vsel %vm925, %v2193, %v2197
        %v2200 = vshrl.u32 %v1983, 16
        %v2202 = vrot.slane %v2200, 4
        %v2203 = vshll.u32 %v1983, 16
        %v2205 = vrot.slane %v2203, 5
        %v2206 = vor.u32 %v2202, %v2205
        %v2207 = vrot.slane %v2206, 4
        %v2209 = vshll.u32 %v1984, 16
        %v2211 = vrot.slane %v2209, 5
        %v2212 = vsel %vm925, %v2207, %v2211
        %v2213 = vshrl.u32 %v1984, 16
        %v2215 = vrot.slane %v2213, 4
        %v2216 = vor.u32 %v2215, %v2211
        %v2217 = vrot.slane %v2216, 4
        %v2219 = vshll.u32 %v1985, 16
        %v2221 = vrot.slane %v2219, 5
        %v2222 = vsel %vm925, %v2217, %v2221
        %v2224 = vshrl.u32 %v1986, 16
        %v2226 = vrot.slane %v2224, 4
        %v2227 = vshll.u32 %v1986, 16
        %v2229 = vrot.slane %v2227, 5
        %v2230 = vor.u32 %v2226, %v2229
        %v2231 = vrot.slane %v2230, 4
        %v2233 = vshll.u32 %v1987, 16
        %v2235 = vrot.slane %v2233, 5
        %v2236 = vsel %vm925, %v2231, %v2235
        %v2237 = vshrl.u32 %v1987, 16
        %v2239 = vrot.slane %v2237, 4
        %v2240 = vor.u32 %v2239, %v2235
        %v2241 = vrot.slane %v2240, 4
        %v2243 = vshll.u32 %v1988, 16
        %v2245 = vrot.slane %v2243, 5
        %v2246 = vsel %vm925, %v2241, %v2245
        %v2248 = vshrl.u32 %v1989, 16
        %v2250 = vrot.slane %v2248, 4
        %v2251 = vshll.u32 %v1989, 16
        %v2253 = vrot.slane %v2251, 5
        %v2254 = vor.u32 %v2250, %v2253
        %v2255 = vrot.slane %v2254, 4
        %v2257 = vshll.u32 %v1990, 16
        %v2259 = vrot.slane %v2257, 5
        %v2260 = vsel %vm925, %v2255, %v2259
        %v2261 = vshrl.u32 %v1990, 16
        %v2263 = vrot.slane %v2261, 4
        %v2264 = vor.u32 %v2263, %v2259
        %v2265 = vrot.slane %v2264, 4
        %v2267 = vshll.u32 %v1991, 16
        %v2269 = vrot.slane %v2267, 5
        %v2270 = vsel %vm925, %v2265, %v2269
        %v2272 = vshrl.u32 %v1992, 16
        %v2274 = vrot.slane %v2272, 4
        %v2275 = vshll.u32 %v1992, 16
        %v2277 = vrot.slane %v2275, 5
        %v2278 = vor.u32 %v2274, %v2277
        %v2279 = vrot.slane %v2278, 4
        %v2281 = vshll.u32 %v1993, 16
        %v2283 = vrot.slane %v2281, 5
        %v2284 = vsel %vm925, %v2279, %v2283
        %v2285 = vshrl.u32 %v1993, 16
        %v2287 = vrot.slane %v2285, 4
        %v2288 = vor.u32 %v2287, %v2283
        %v2289 = vrot.slane %v2288, 4
        %v2291 = vshll.u32 %v1994, 16
        %v2293 = vrot.slane %v2291, 5
        %v2294 = vsel %vm925, %v2289, %v2293
        %v2296 = vshrl.u32 %v1995, 16
        %v2298 = vrot.slane %v2296, 4
        %v2299 = vshll.u32 %v1995, 16
        %v2301 = vrot.slane %v2299, 5
        %v2302 = vor.u32 %v2298, %v2301
        %v2303 = vrot.slane %v2302, 4
        %v2305 = vshll.u32 %v1996, 16
        %v2307 = vrot.slane %v2305, 5
        %v2308 = vsel %vm925, %v2303, %v2307
        %v2309 = vshrl.u32 %v1996, 16
        %v2311 = vrot.slane %v2309, 4
        %v2312 = vor.u32 %v2311, %v2307
        %v2313 = vrot.slane %v2312, 4
        %v2315 = vshll.u32 %v1997, 16
        %v2317 = vrot.slane %v2315, 5
        %v2318 = vsel %vm925, %v2313, %v2317
        %v2320 = vshrl.u32 %v1998, 16
        %v2322 = vrot.slane %v2320, 4
        %v2323 = vshll.u32 %v1998, 16
        %v2325 = vrot.slane %v2323, 5
        %v2326 = vor.u32 %v2322, %v2325
        %v2327 = vrot.slane %v2326, 4
        %v2329 = vshll.u32 %v1999, 16
        %v2331 = vrot.slane %v2329, 5
        %v2332 = vsel %vm925, %v2327, %v2331
        %v2333 = vshrl.u32 %v1999, 16
        %v2335 = vrot.slane %v2333, 4
        %v2336 = vor.u32 %v2335, %v2331
        %v2337 = vrot.slane %v2336, 4
        %v2339 = vshll.u32 %v2000, 16
        %v2341 = vrot.slane %v2339, 5
        %v2342 = vsel %vm925, %v2337, %v2341
        %v2344 = vshrl.u32 %v2001, 16
        %v2346 = vrot.slane %v2344, 4
        %v2347 = vshll.u32 %v2001, 16
        %v2349 = vrot.slane %v2347, 5
        %v2350 = vor.u32 %v2346, %v2349
        %v2351 = vrot.slane %v2350, 4
        %v2353 = vshll.u32 %v2002, 16
        %v2355 = vrot.slane %v2353, 5
        %v2356 = vsel %vm925, %v2351, %v2355
        %v2357 = vshrl.u32 %v2002, 16
        %v2359 = vrot.slane %v2357, 4
        %v2360 = vor.u32 %v2359, %v2355
        %v2361 = vrot.slane %v2360, 4
        %v2363 = vshll.u32 %v2003, 16
        %v2365 = vrot.slane %v2363, 5
        %v2366 = vsel %vm925, %v2361, %v2365
        %v2368 = vshrl.u32 %v2004, 16
        %v2370 = vrot.slane %v2368, 4
        %v2371 = vshll.u32 %v2004, 16
        %v2373 = vrot.slane %v2371, 5
        %v2374 = vor.u32 %v2370, %v2373
        %v2375 = vrot.slane %v2374, 4
        %v2377 = vshll.u32 %v2005, 16
        %v2379 = vrot.slane %v2377, 5
        %v2380 = vsel %vm925, %v2375, %v2379
        %v2381 = vshrl.u32 %v2005, 16
        %v2383 = vrot.slane %v2381, 4
        %v2384 = vor.u32 %v2383, %v2379
        %v2385 = vrot.slane %v2384, 4
        %v2387 = vshll.u32 %v2006, 16
        %v2389 = vrot.slane %v2387, 5
        %v2390 = vsel %vm925, %v2385, %v2389
        %v2391 = vld [vmem:[#allocation2] sm:$0xff]
        %v2392 = vld [vmem:[#allocation2 + $0x8] sm:$0xff]
        %v2393 = vld [vmem:[#allocation2 + $0x10] sm:$0xff]
        %v2394 = vld [vmem:[#allocation2 + $0x18] sm:$0xff]
        %v2395 = vld [vmem:[#allocation2 + $0x20] sm:$0xff]
        %v2396 = vld [vmem:[#allocation2 + $0x28] sm:$0xff]
        %v2397 = vld [vmem:[#allocation2 + $0x30] sm:$0xff]
        %v2398 = vld [vmem:[#allocation2 + $0x38] sm:$0xff]
        %v2399 = vld [vmem:[#allocation2 + $0x40] sm:$0xff]
        %v2400 = vld [vmem:[#allocation2 + $0x48] sm:$0xff]
        %v2401 = vld [vmem:[#allocation2 + $0x50] sm:$0xff]
        %v2402 = vld [vmem:[#allocation2 + $0x58] sm:$0xff]
        %v2403 = vld [vmem:[#allocation2 + $0x60] sm:$0xff]
        %v2404 = vld [vmem:[#allocation2 + $0x68] sm:$0xff]
        %v2405 = vld [vmem:[#allocation2 + $0x70] sm:$0xff]
        %v2406 = vld [vmem:[#allocation2 + $0x78] sm:$0xff]
        %v2407 = vld [vmem:[#allocation2 + $0x80] sm:$0xff]
        %v2408 = vld [vmem:[#allocation2 + $0x88] sm:$0xff]
        %v2409 = vld [vmem:[#allocation2 + $0x90] sm:$0xff]
        %v2410 = vld [vmem:[#allocation2 + $0x98] sm:$0xff]
        %v2411 = vld [vmem:[#allocation2 + $0xa0] sm:$0xff]
        %v2412 = vld [vmem:[#allocation2 + $0xa8] sm:$0xff]
        %v2413 = vld [vmem:[#allocation2 + $0xb0] sm:$0xff]
        %v2414 = vld [vmem:[#allocation2 + $0xb8] sm:$0xff]
        %v2415 = vld [vmem:[#allocation2 + $0xc0] sm:$0xff]
        %v2416 = vld [vmem:[#allocation2 + $0xc8] sm:$0xff]
        %v2417 = vld [vmem:[#allocation2 + $0xd0] sm:$0xff]
        %v2418 = vld [vmem:[#allocation2 + $0xd8] sm:$0xff]
        %v2419 = vld [vmem:[#allocation2 + $0xe0] sm:$0xff]
        %v2420 = vld [vmem:[#allocation2 + $0xe8] sm:$0xff]
        %v2421 = vld [vmem:[#allocation2 + $0xf0] sm:$0xff]
        %v2422 = vld [vmem:[#allocation2 + $0xf8] sm:$0xff]
        %s2423 = scalar_lea.vmem %s2, 24
        %v2424 = vld [vmem:[%s2423] sm:$0xf]
        %v2425 = vld [vmem:[%s2423 + $0x4] sm:$0x3]
        %v2426 = vunpack.c.l.b16 %v2020
        %v2427 = vunpack.c.l.b16 %v2030
        %v2428 = vunpack.c.l.b16 %v2044
        %v2429 = vunpack.c.l.b16 %v2054
        %v2430 = vunpack.c.l.b16 %v2068
        %v2431 = vunpack.c.l.b16 %v2078
        %v2432 = vunpack.c.l.b16 %v2092
        %v2433 = vunpack.c.l.b16 %v2102
        %v2434 = vunpack.c.l.b16 %v2116
        %v2435 = vunpack.c.l.b16 %v2126
        %v2436 = vunpack.c.l.b16 %v2140
        %v2437 = vunpack.c.l.b16 %v2150
        %v2438 = vunpack.c.l.b16 %v2164
        %v2439 = vunpack.c.l.b16 %v2174
        %v2440 = vunpack.c.l.b16 %v2188
        %v2441 = vunpack.c.l.b16 %v2198
        %v2442 = vunpack.c.l.b16 %v2212
        %v2443 = vunpack.c.l.b16 %v2222
        %v2444 = vunpack.c.l.b16 %v2236
        %v2445 = vunpack.c.l.b16 %v2246
        %v2446 = vunpack.c.l.b16 %v2260
        %v2447 = vunpack.c.l.b16 %v2270
        %v2448 = vunpack.c.l.b16 %v2284
        %v2449 = vunpack.c.l.b16 %v2294
        %v2450 = vunpack.c.l.b16 %v2308
        %v2451 = vunpack.c.l.b16 %v2318
        %v2452 = vunpack.c.l.b16 %v2332
        %v2453 = vunpack.c.l.b16 %v2342
        %v2454 = vunpack.c.l.b16 %v2356
        %v2455 = vunpack.c.l.b16 %v2366
        %v2456 = vunpack.c.l.b16 %v2380
        %v2457 = vunpack.c.l.b16 %v2390
        %v2458 = vpack.c.b16 %v2427, %v2426
        %v2459 = vpack.c.b16 %v2429, %v2428
        %v2460 = vpack.c.b16 %v2431, %v2430
        %v2461 = vpack.c.b16 %v2433, %v2432
        %v2462 = vpack.c.b16 %v2435, %v2434
        %v2463 = vpack.c.b16 %v2437, %v2436
        %v2464 = vpack.c.b16 %v2439, %v2438
        %v2465 = vpack.c.b16 %v2441, %v2440
        %v2466 = vpack.c.b16 %v2443, %v2442
        %v2467 = vpack.c.b16 %v2445, %v2444
        %v2468 = vpack.c.b16 %v2447, %v2446
        %v2469 = vpack.c.b16 %v2449, %v2448
        %v2470 = vpack.c.b16 %v2451, %v2450
        %v2471 = vpack.c.b16 %v2453, %v2452
        %v2472 = vpack.c.b16 %v2455, %v2454
        %v2473 = vpack.c.b16 %v2457, %v2456
        %v2476 = vunpack.c.l.b16 %v2424
        %v2477 = vunpack.c.l.b16 %v2425
        %v2478 = vpack.c.b16 %v2477, %v2476
        %v2480 = vsel %vm669, %v2458, 0
        %v2483 = vsel %vm669, %v2459, 0
        %v2486 = vsel %vm669, %v2460, 0
        %v2489 = vsel %vm669, %v2461, 0
        %v2492 = vsel %vm669, %v2462, 0
        %v2495 = vsel %vm669, %v2463, 0
        %v2498 = vsel %vm669, %v2464, 0
        %v2501 = vsel %vm669, %v2465, 0
        %v2504 = vsel %vm669, %v2466, 0
        %v2507 = vsel %vm669, %v2467, 0
        %v2510 = vsel %vm669, %v2468, 0
        %v2513 = vsel %vm669, %v2469, 0
        %v2516 = vsel %vm669, %v2470, 0
        %v2519 = vsel %vm669, %v2471, 0
        %v2522 = vsel %vm669, %v2472, 0
        %v2525 = vsel %vm669, %v2473, 0
        %v2528 = vsel %vm718, %v2478, 0
        %2530 = vmatpush.bf16.msra.mxu0 0
        %2531 = vmatpush.bf16.msra.mxu0 0
        %2532 = vmatpush.bf16.msra.mxu0 0
        %2533 = vmatpush.bf16.msra.mxu0 0
        %2534 = vmatpush.bf16.msra.mxu0 0
        %2535 = vmatpush.bf16.msra.mxu0 0
        %2536 = vmatpush.bf16.msra.mxu0 0
        %2537 = vmatpush.bf16.msra.mxu0 %v2528
        %2538 = vmatmul.bf16.gmra.mxu0 %v2480
        %v2539 = vpop.f32.mrf.mxu0
        %v2540 = vadd.f32 0.0, %v2539
        %v2541 = vpop.f32.mrf.mxu0
        %v2542 = vadd.f32 0.0, %v2541
        %2543 = vmatmul.bf16.gmra.mxu0 %v2483
        %v2544 = vpop.f32.mrf.mxu0
        %v2545 = vadd.f32 0.0, %v2544
        %v2546 = vpop.f32.mrf.mxu0
        %v2547 = vadd.f32 0.0, %v2546
        %2548 = vmatmul.bf16.gmra.mxu0 %v2486
        %v2549 = vpop.f32.mrf.mxu0
        %v2550 = vadd.f32 0.0, %v2549
        %v2551 = vpop.f32.mrf.mxu0
        %v2552 = vadd.f32 0.0, %v2551
        %2553 = vmatmul.bf16.gmra.mxu0 %v2489
        %v2554 = vpop.f32.mrf.mxu0
        %v2555 = vadd.f32 0.0, %v2554
        %v2556 = vpop.f32.mrf.mxu0
        %v2557 = vadd.f32 0.0, %v2556
        %2558 = vmatmul.bf16.gmra.mxu0 %v2492
        %v2559 = vpop.f32.mrf.mxu0
        %v2560 = vadd.f32 0.0, %v2559
        %v2561 = vpop.f32.mrf.mxu0
        %v2562 = vadd.f32 0.0, %v2561
        %2563 = vmatmul.bf16.gmra.mxu0 %v2495
        %v2564 = vpop.f32.mrf.mxu0
        %v2565 = vadd.f32 0.0, %v2564
        %v2566 = vpop.f32.mrf.mxu0
        %v2567 = vadd.f32 0.0, %v2566
        %2568 = vmatmul.bf16.gmra.mxu0 %v2498
        %v2569 = vpop.f32.mrf.mxu0
        %v2570 = vadd.f32 0.0, %v2569
        %v2571 = vpop.f32.mrf.mxu0
        %v2572 = vadd.f32 0.0, %v2571
        %2573 = vmatmul.bf16.gmra.mxu0 %v2501
        %v2574 = vpop.f32.mrf.mxu0
        %v2575 = vadd.f32 0.0, %v2574
        %v2576 = vpop.f32.mrf.mxu0
        %v2577 = vadd.f32 0.0, %v2576
        %2578 = vmatmul.bf16.gmra.mxu0 %v2504
        %v2579 = vpop.f32.mrf.mxu0
        %v2580 = vadd.f32 0.0, %v2579
        %v2581 = vpop.f32.mrf.mxu0
        %v2582 = vadd.f32 0.0, %v2581
        %2583 = vmatmul.bf16.gmra.mxu0 %v2507
        %v2584 = vpop.f32.mrf.mxu0
        %v2585 = vadd.f32 0.0, %v2584
        %v2586 = vpop.f32.mrf.mxu0
        %v2587 = vadd.f32 0.0, %v2586
        %2588 = vmatmul.bf16.gmra.mxu0 %v2510
        %v2589 = vpop.f32.mrf.mxu0
        %v2590 = vadd.f32 0.0, %v2589
        %v2591 = vpop.f32.mrf.mxu0
        %v2592 = vadd.f32 0.0, %v2591
        %2593 = vmatmul.bf16.gmra.mxu0 %v2513
        %v2594 = vpop.f32.mrf.mxu0
        %v2595 = vadd.f32 0.0, %v2594
        %v2596 = vpop.f32.mrf.mxu0
        %v2597 = vadd.f32 0.0, %v2596
        %2598 = vmatmul.bf16.gmra.mxu0 %v2516
        %v2599 = vpop.f32.mrf.mxu0
        %v2600 = vadd.f32 0.0, %v2599
        %v2601 = vpop.f32.mrf.mxu0
        %v2602 = vadd.f32 0.0, %v2601
        %2603 = vmatmul.bf16.gmra.mxu0 %v2519
        %v2604 = vpop.f32.mrf.mxu0
        %v2605 = vadd.f32 0.0, %v2604
        %v2606 = vpop.f32.mrf.mxu0
        %v2607 = vadd.f32 0.0, %v2606
        %2608 = vmatmul.bf16.gmra.mxu0 %v2522
        %v2609 = vpop.f32.mrf.mxu0
        %v2610 = vadd.f32 0.0, %v2609
        %v2611 = vpop.f32.mrf.mxu0
        %v2612 = vadd.f32 0.0, %v2611
        %2613 = vmatmul.bf16.gmra.mxu0 %v2525
        %v2614 = vpop.f32.mrf.mxu0
        %v2615 = vadd.f32 0.0, %v2614
        %v2616 = vpop.f32.mrf.mxu0
        %v2617 = vadd.f32 0.0, %v2616
        %2618 = vdwg.mxu0
        %v2619 = vadd.f32 %v2391, %v2540
        %v2620 = vadd.f32 %v2392, %v2542
        %v2621 = vadd.f32 %v2393, %v2545
        %v2622 = vadd.f32 %v2394, %v2547
        %v2623 = vadd.f32 %v2395, %v2550
        %v2624 = vadd.f32 %v2396, %v2552
        %v2625 = vadd.f32 %v2397, %v2555
        %v2626 = vadd.f32 %v2398, %v2557
        %v2627 = vadd.f32 %v2399, %v2560
        %v2628 = vadd.f32 %v2400, %v2562
        %v2629 = vadd.f32 %v2401, %v2565
        %v2630 = vadd.f32 %v2402, %v2567
        %v2631 = vadd.f32 %v2403, %v2570
        %v2632 = vadd.f32 %v2404, %v2572
        %v2633 = vadd.f32 %v2405, %v2575
        %v2634 = vadd.f32 %v2406, %v2577
        %v2635 = vadd.f32 %v2407, %v2580
        %v2636 = vadd.f32 %v2408, %v2582
        %v2637 = vadd.f32 %v2409, %v2585
        %v2638 = vadd.f32 %v2410, %v2587
        %v2639 = vadd.f32 %v2411, %v2590
        %v2640 = vadd.f32 %v2412, %v2592
        %v2641 = vadd.f32 %v2413, %v2595
        %v2642 = vadd.f32 %v2414, %v2597
        %v2643 = vadd.f32 %v2415, %v2600
        %v2644 = vadd.f32 %v2416, %v2602
        %v2645 = vadd.f32 %v2417, %v2605
        %v2646 = vadd.f32 %v2418, %v2607
        %v2647 = vadd.f32 %v2419, %v2610
        %v2648 = vadd.f32 %v2420, %v2612
        %v2649 = vadd.f32 %v2421, %v2615
        %v2650 = vadd.f32 %v2422, %v2617
        %2651 = vst.msk [vmem:[#allocation2] sm:$0xff] %vm485, %v2619
        %2652 = vst.msk [vmem:[#allocation2 + $0x8] sm:$0xff] %vm485, %v2620
        %2653 = vst.msk [vmem:[#allocation2 + $0x10] sm:$0xff] %vm485, %v2621
        %2654 = vst.msk [vmem:[#allocation2 + $0x18] sm:$0xff] %vm485, %v2622
        %2655 = vst.msk [vmem:[#allocation2 + $0x20] sm:$0xff] %vm485, %v2623
        %2656 = vst.msk [vmem:[#allocation2 + $0x28] sm:$0xff] %vm485, %v2624
        %2657 = vst.msk [vmem:[#allocation2 + $0x30] sm:$0xff] %vm485, %v2625
        %2658 = vst.msk [vmem:[#allocation2 + $0x38] sm:$0xff] %vm485, %v2626
        %2659 = vst.msk [vmem:[#allocation2 + $0x40] sm:$0xff] %vm485, %v2627
        %2660 = vst.msk [vmem:[#allocation2 + $0x48] sm:$0xff] %vm485, %v2628
        %2661 = vst.msk [vmem:[#allocation2 + $0x50] sm:$0xff] %vm485, %v2629
        %2662 = vst.msk [vmem:[#allocation2 + $0x58] sm:$0xff] %vm485, %v2630
        %2663 = vst.msk [vmem:[#allocation2 + $0x60] sm:$0xff] %vm485, %v2631
        %2664 = vst.msk [vmem:[#allocation2 + $0x68] sm:$0xff] %vm485, %v2632
        %2665 = vst.msk [vmem:[#allocation2 + $0x70] sm:$0xff] %vm485, %v2633
        %2666 = vst.msk [vmem:[#allocation2 + $0x78] sm:$0xff] %vm485, %v2634
        %2667 = vst.msk [vmem:[#allocation2 + $0x80] sm:$0xff] %vm485, %v2635
        %2668 = vst.msk [vmem:[#allocation2 + $0x88] sm:$0xff] %vm485, %v2636
        %2669 = vst.msk [vmem:[#allocation2 + $0x90] sm:$0xff] %vm485, %v2637
        %2670 = vst.msk [vmem:[#allocation2 + $0x98] sm:$0xff] %vm485, %v2638
        %2671 = vst.msk [vmem:[#allocation2 + $0xa0] sm:$0xff] %vm485, %v2639
        %2672 = vst.msk [vmem:[#allocation2 + $0xa8] sm:$0xff] %vm485, %v2640
        %2673 = vst.msk [vmem:[#allocation2 + $0xb0] sm:$0xff] %vm485, %v2641
        %2674 = vst.msk [vmem:[#allocation2 + $0xb8] sm:$0xff] %vm485, %v2642
        %2675 = vst.msk [vmem:[#allocation2 + $0xc0] sm:$0xff] %vm485, %v2643
        %2676 = vst.msk [vmem:[#allocation2 + $0xc8] sm:$0xff] %vm485, %v2644
        %2677 = vst.msk [vmem:[#allocation2 + $0xd0] sm:$0xff] %vm485, %v2645
        %2678 = vst.msk [vmem:[#allocation2 + $0xd8] sm:$0xff] %vm485, %v2646
        %2679 = vst.msk [vmem:[#allocation2 + $0xe0] sm:$0xff] %vm485, %v2647
        %2680 = vst.msk [vmem:[#allocation2 + $0xe8] sm:$0xff] %vm485, %v2648
        %2681 = vst.msk [vmem:[#allocation2 + $0xf0] sm:$0xff] %vm485, %v2649
        %2682 = vst.msk [vmem:[#allocation2 + $0xf8] sm:$0xff] %vm485, %v2650
        %v2683 = vld [vmem:[#allocation2] sm:$0xff]
        %v2684 = vld [vmem:[#allocation2 + $0x8] sm:$0xff]
        %v2685 = vld [vmem:[#allocation2 + $0x10] sm:$0xff]
        %v2686 = vld [vmem:[#allocation2 + $0x18] sm:$0xff]
        %v2687 = vld [vmem:[#allocation2 + $0x20] sm:$0xff]
        %v2688 = vld [vmem:[#allocation2 + $0x28] sm:$0xff]
        %v2689 = vld [vmem:[#allocation2 + $0x30] sm:$0xff]
        %v2690 = vld [vmem:[#allocation2 + $0x38] sm:$0xff]
        %v2691 = vld [vmem:[#allocation2 + $0x40] sm:$0xff]
        %v2692 = vld [vmem:[#allocation2 + $0x48] sm:$0xff]
        %v2693 = vld [vmem:[#allocation2 + $0x50] sm:$0xff]
        %v2694 = vld [vmem:[#allocation2 + $0x58] sm:$0xff]
        %v2695 = vld [vmem:[#allocation2 + $0x60] sm:$0xff]
        %v2696 = vld [vmem:[#allocation2 + $0x68] sm:$0xff]
        %v2697 = vld [vmem:[#allocation2 + $0x70] sm:$0xff]
        %v2698 = vld [vmem:[#allocation2 + $0x78] sm:$0xff]
        %v2699 = vld [vmem:[#allocation2 + $0x80] sm:$0xff]
        %v2700 = vld [vmem:[#allocation2 + $0x88] sm:$0xff]
        %v2701 = vld [vmem:[#allocation2 + $0x90] sm:$0xff]
        %v2702 = vld [vmem:[#allocation2 + $0x98] sm:$0xff]
        %v2703 = vld [vmem:[#allocation2 + $0xa0] sm:$0xff]
        %v2704 = vld [vmem:[#allocation2 + $0xa8] sm:$0xff]
        %v2705 = vld [vmem:[#allocation2 + $0xb0] sm:$0xff]
        %v2706 = vld [vmem:[#allocation2 + $0xb8] sm:$0xff]
        %v2707 = vld [vmem:[#allocation2 + $0xc0] sm:$0xff]
        %v2708 = vld [vmem:[#allocation2 + $0xc8] sm:$0xff]
        %v2709 = vld [vmem:[#allocation2 + $0xd0] sm:$0xff]
        %v2710 = vld [vmem:[#allocation2 + $0xd8] sm:$0xff]
        %v2711 = vld [vmem:[#allocation2 + $0xe0] sm:$0xff]
        %v2712 = vld [vmem:[#allocation2 + $0xe8] sm:$0xff]
        %v2713 = vld [vmem:[#allocation2 + $0xf0] sm:$0xff]
        %v2714 = vld [vmem:[#allocation2 + $0xf8] sm:$0xff]
        %v2715 = vld [vmem:[%s3] sm:$0x1]
        %v2717 = vperm.slane %v2715, 0
        %v2719 = vmul.f32 %v2683, %v2717
        %v2720 = vmul.f32 %v2684, %v2717
        %v2721 = vmul.f32 %v2685, %v2717
        %v2722 = vmul.f32 %v2686, %v2717
        %v2723 = vmul.f32 %v2687, %v2717
        %v2724 = vmul.f32 %v2688, %v2717
        %v2725 = vmul.f32 %v2689, %v2717
        %v2726 = vmul.f32 %v2690, %v2717
        %v2727 = vmul.f32 %v2691, %v2717
        %v2728 = vmul.f32 %v2692, %v2717
        %v2729 = vmul.f32 %v2693, %v2717
        %v2730 = vmul.f32 %v2694, %v2717
        %v2731 = vmul.f32 %v2695, %v2717
        %v2732 = vmul.f32 %v2696, %v2717
        %v2733 = vmul.f32 %v2697, %v2717
        %v2734 = vmul.f32 %v2698, %v2717
        %v2735 = vmul.f32 %v2699, %v2717
        %v2736 = vmul.f32 %v2700, %v2717
        %v2737 = vmul.f32 %v2701, %v2717
        %v2738 = vmul.f32 %v2702, %v2717
        %v2739 = vmul.f32 %v2703, %v2717
        %v2740 = vmul.f32 %v2704, %v2717
        %v2741 = vmul.f32 %v2705, %v2717
        %v2742 = vmul.f32 %v2706, %v2717
        %v2743 = vmul.f32 %v2707, %v2717
        %v2744 = vmul.f32 %v2708, %v2717
        %v2745 = vmul.f32 %v2709, %v2717
        %v2746 = vmul.f32 %v2710, %v2717
        %v2747 = vmul.f32 %v2711, %v2717
        %v2748 = vmul.f32 %v2712, %v2717
        %v2749 = vmul.f32 %v2713, %v2717
        %v2750 = vmul.f32 %v2714, %v2717
        %v2751 = vld [vmem:[%s4] sm:$0x1]
        %v2753 = vperm.slane %v2751, 0
        %v2755 = vadd.f32 %v2719, %v2753
        %v2756 = vadd.f32 %v2720, %v2753
        %v2757 = vadd.f32 %v2721, %v2753
        %v2758 = vadd.f32 %v2722, %v2753
        %v2759 = vadd.f32 %v2723, %v2753
        %v2760 = vadd.f32 %v2724, %v2753
        %v2761 = vadd.f32 %v2725, %v2753
        %v2762 = vadd.f32 %v2726, %v2753
        %v2763 = vadd.f32 %v2727, %v2753
        %v2764 = vadd.f32 %v2728, %v2753
        %v2765 = vadd.f32 %v2729, %v2753
        %v2766 = vadd.f32 %v2730, %v2753
        %v2767 = vadd.f32 %v2731, %v2753
        %v2768 = vadd.f32 %v2732, %v2753
        %v2769 = vadd.f32 %v2733, %v2753
        %v2770 = vadd.f32 %v2734, %v2753
        %v2771 = vadd.f32 %v2735, %v2753
        %v2772 = vadd.f32 %v2736, %v2753
        %v2773 = vadd.f32 %v2737, %v2753
        %v2774 = vadd.f32 %v2738, %v2753
        %v2775 = vadd.f32 %v2739, %v2753
        %v2776 = vadd.f32 %v2740, %v2753
        %v2777 = vadd.f32 %v2741, %v2753
        %v2778 = vadd.f32 %v2742, %v2753
        %v2779 = vadd.f32 %v2743, %v2753
        %v2780 = vadd.f32 %v2744, %v2753
        %v2781 = vadd.f32 %v2745, %v2753
        %v2782 = vadd.f32 %v2746, %v2753
        %v2783 = vadd.f32 %v2747, %v2753
        %v2784 = vadd.f32 %v2748, %v2753
        %v2785 = vadd.f32 %v2749, %v2753
        %v2786 = vadd.f32 %v2750, %v2753
        %vm2787 = vcmp.ge.f32.partialorder %v2755, 0.0
        %vm2788 = vcmp.ge.f32.partialorder %v2756, 0.0
        %vm2789 = vcmp.ge.f32.partialorder %v2757, 0.0
        %vm2790 = vcmp.ge.f32.partialorder %v2758, 0.0
        %vm2791 = vcmp.ge.f32.partialorder %v2759, 0.0
        %vm2792 = vcmp.ge.f32.partialorder %v2760, 0.0
        %vm2793 = vcmp.ge.f32.partialorder %v2761, 0.0
        %vm2794 = vcmp.ge.f32.partialorder %v2762, 0.0
        %vm2795 = vcmp.ge.f32.partialorder %v2763, 0.0
        %vm2796 = vcmp.ge.f32.partialorder %v2764, 0.0
        %vm2797 = vcmp.ge.f32.partialorder %v2765, 0.0
        %vm2798 = vcmp.ge.f32.partialorder %v2766, 0.0
        %vm2799 = vcmp.ge.f32.partialorder %v2767, 0.0
        %vm2800 = vcmp.ge.f32.partialorder %v2768, 0.0
        %vm2801 = vcmp.ge.f32.partialorder %v2769, 0.0
        %vm2802 = vcmp.ge.f32.partialorder %v2770, 0.0
        %vm2803 = vcmp.ge.f32.partialorder %v2771, 0.0
        %vm2804 = vcmp.ge.f32.partialorder %v2772, 0.0
        %vm2805 = vcmp.ge.f32.partialorder %v2773, 0.0
        %vm2806 = vcmp.ge.f32.partialorder %v2774, 0.0
        %vm2807 = vcmp.ge.f32.partialorder %v2775, 0.0
        %vm2808 = vcmp.ge.f32.partialorder %v2776, 0.0
        %vm2809 = vcmp.ge.f32.partialorder %v2777, 0.0
        %vm2810 = vcmp.ge.f32.partialorder %v2778, 0.0
        %vm2811 = vcmp.ge.f32.partialorder %v2779, 0.0
        %vm2812 = vcmp.ge.f32.partialorder %v2780, 0.0
        %vm2813 = vcmp.ge.f32.partialorder %v2781, 0.0
        %vm2814 = vcmp.ge.f32.partialorder %v2782, 0.0
        %vm2815 = vcmp.ge.f32.partialorder %v2783, 0.0
        %vm2816 = vcmp.ge.f32.partialorder %v2784, 0.0
        %vm2817 = vcmp.ge.f32.partialorder %v2785, 0.0
        %vm2818 = vcmp.ge.f32.partialorder %v2786, 0.0
        %v2819 = vmul.f32 %v2755, 0.2
        %v2820 = vmul.f32 %v2756, 0.2
        %v2821 = vmul.f32 %v2757, 0.2
        %v2822 = vmul.f32 %v2758, 0.2
        %v2823 = vmul.f32 %v2759, 0.2
        %v2824 = vmul.f32 %v2760, 0.2
        %v2825 = vmul.f32 %v2761, 0.2
        %v2826 = vmul.f32 %v2762, 0.2
        %v2827 = vmul.f32 %v2763, 0.2
        %v2828 = vmul.f32 %v2764, 0.2
        %v2829 = vmul.f32 %v2765, 0.2
        %v2830 = vmul.f32 %v2766, 0.2
        %v2831 = vmul.f32 %v2767, 0.2
        %v2832 = vmul.f32 %v2768, 0.2
        %v2833 = vmul.f32 %v2769, 0.2
        %v2834 = vmul.f32 %v2770, 0.2
        %v2835 = vmul.f32 %v2771, 0.2
        %v2836 = vmul.f32 %v2772, 0.2
        %v2837 = vmul.f32 %v2773, 0.2
        %v2838 = vmul.f32 %v2774, 0.2
        %v2839 = vmul.f32 %v2775, 0.2
        %v2840 = vmul.f32 %v2776, 0.2
        %v2841 = vmul.f32 %v2777, 0.2
        %v2842 = vmul.f32 %v2778, 0.2
        %v2843 = vmul.f32 %v2779, 0.2
        %v2844 = vmul.f32 %v2780, 0.2
        %v2845 = vmul.f32 %v2781, 0.2
        %v2846 = vmul.f32 %v2782, 0.2
        %v2847 = vmul.f32 %v2783, 0.2
        %v2848 = vmul.f32 %v2784, 0.2
        %v2849 = vmul.f32 %v2785, 0.2
        %v2850 = vmul.f32 %v2786, 0.2
        %v2851 = vsel %vm2787, %v2755, %v2819
        %v2852 = vsel %vm2788, %v2756, %v2820
        %v2853 = vsel %vm2789, %v2757, %v2821
        %v2854 = vsel %vm2790, %v2758, %v2822
        %v2855 = vsel %vm2791, %v2759, %v2823
        %v2856 = vsel %vm2792, %v2760, %v2824
        %v2857 = vsel %vm2793, %v2761, %v2825
        %v2858 = vsel %vm2794, %v2762, %v2826
        %v2859 = vsel %vm2795, %v2763, %v2827
        %v2860 = vsel %vm2796, %v2764, %v2828
        %v2861 = vsel %vm2797, %v2765, %v2829
        %v2862 = vsel %vm2798, %v2766, %v2830
        %v2863 = vsel %vm2799, %v2767, %v2831
        %v2864 = vsel %vm2800, %v2768, %v2832
        %v2865 = vsel %vm2801, %v2769, %v2833
        %v2866 = vsel %vm2802, %v2770, %v2834
        %v2867 = vsel %vm2803, %v2771, %v2835
        %v2868 = vsel %vm2804, %v2772, %v2836
        %v2869 = vsel %vm2805, %v2773, %v2837
        %v2870 = vsel %vm2806, %v2774, %v2838
        %v2871 = vsel %vm2807, %v2775, %v2839
        %v2872 = vsel %vm2808, %v2776, %v2840
        %v2873 = vsel %vm2809, %v2777, %v2841
        %v2874 = vsel %vm2810, %v2778, %v2842
        %v2875 = vsel %vm2811, %v2779, %v2843
        %v2876 = vsel %vm2812, %v2780, %v2844
        %v2877 = vsel %vm2813, %v2781, %v2845
        %v2878 = vsel %vm2814, %v2782, %v2846
        %v2879 = vsel %vm2815, %v2783, %v2847
        %v2880 = vsel %vm2816, %v2784, %v2848
        %v2881 = vsel %vm2817, %v2785, %v2849
        %v2882 = vsel %vm2818, %v2786, %v2850
        %v2883 = vpack.c.bf16 %v2851, %v2851
        %v2884 = vpack.c.bf16 %v2852, %v2852
        %v2885 = vpack.c.bf16 %v2853, %v2853
        %v2886 = vpack.c.bf16 %v2854, %v2854
        %v2887 = vpack.c.bf16 %v2855, %v2855
        %v2888 = vpack.c.bf16 %v2856, %v2856
        %v2889 = vpack.c.bf16 %v2857, %v2857
        %v2890 = vpack.c.bf16 %v2858, %v2858
        %v2891 = vpack.c.bf16 %v2859, %v2859
        %v2892 = vpack.c.bf16 %v2860, %v2860
        %v2893 = vpack.c.bf16 %v2861, %v2861
        %v2894 = vpack.c.bf16 %v2862, %v2862
        %v2895 = vpack.c.bf16 %v2863, %v2863
        %v2896 = vpack.c.bf16 %v2864, %v2864
        %v2897 = vpack.c.bf16 %v2865, %v2865
        %v2898 = vpack.c.bf16 %v2866, %v2866
        %v2899 = vpack.c.bf16 %v2867, %v2867
        %v2900 = vpack.c.bf16 %v2868, %v2868
        %v2901 = vpack.c.bf16 %v2869, %v2869
        %v2902 = vpack.c.bf16 %v2870, %v2870
        %v2903 = vpack.c.bf16 %v2871, %v2871
        %v2904 = vpack.c.bf16 %v2872, %v2872
        %v2905 = vpack.c.bf16 %v2873, %v2873
        %v2906 = vpack.c.bf16 %v2874, %v2874
        %v2907 = vpack.c.bf16 %v2875, %v2875
        %v2908 = vpack.c.bf16 %v2876, %v2876
        %v2909 = vpack.c.bf16 %v2877, %v2877
        %v2910 = vpack.c.bf16 %v2878, %v2878
        %v2911 = vpack.c.bf16 %v2879, %v2879
        %v2912 = vpack.c.bf16 %v2880, %v2880
        %v2913 = vpack.c.bf16 %v2881, %v2881
        %v2914 = vpack.c.bf16 %v2882, %v2882
        %vm2915 = vcmask 125952
        %2916 = vst.msk [vmem:[%s297] sm:$0xf] %vm2915, %v2883
        %2917 = vst.msk [vmem:[%s297 + $0x4] sm:$0xf] %vm2915, %v2884
        %2918 = vst.msk [vmem:[%s297 + $0x8] sm:$0xf] %vm2915, %v2885
        %2919 = vst.msk [vmem:[%s297 + $0xc] sm:$0xf] %vm2915, %v2886
        %2920 = vst.msk [vmem:[%s297 + $0x10] sm:$0xf] %vm2915, %v2887
        %2921 = vst.msk [vmem:[%s297 + $0x14] sm:$0xf] %vm2915, %v2888
        %2922 = vst.msk [vmem:[%s297 + $0x18] sm:$0xf] %vm2915, %v2889
        %2923 = vst.msk [vmem:[%s297 + $0x1c] sm:$0xf] %vm2915, %v2890
        %2924 = vst.msk [vmem:[%s297 + $0x20] sm:$0xf] %vm2915, %v2891
        %2925 = vst.msk [vmem:[%s297 + $0x24] sm:$0xf] %vm2915, %v2892
        %2926 = vst.msk [vmem:[%s297 + $0x28] sm:$0xf] %vm2915, %v2893
        %2927 = vst.msk [vmem:[%s297 + $0x2c] sm:$0xf] %vm2915, %v2894
        %2928 = vst.msk [vmem:[%s297 + $0x30] sm:$0xf] %vm2915, %v2895
        %2929 = vst.msk [vmem:[%s297 + $0x34] sm:$0xf] %vm2915, %v2896
        %2930 = vst.msk [vmem:[%s297 + $0x38] sm:$0xf] %vm2915, %v2897
        %2931 = vst.msk [vmem:[%s297 + $0x3c] sm:$0xf] %vm2915, %v2898
        %2932 = vst.msk [vmem:[%s297 + $0x40] sm:$0xf] %vm2915, %v2899
        %2933 = vst.msk [vmem:[%s297 + $0x44] sm:$0xf] %vm2915, %v2900
        %2934 = vst.msk [vmem:[%s297 + $0x48] sm:$0xf] %vm2915, %v2901
        %2935 = vst.msk [vmem:[%s297 + $0x4c] sm:$0xf] %vm2915, %v2902
        %2936 = vst.msk [vmem:[%s297 + $0x50] sm:$0xf] %vm2915, %v2903
        %2937 = vst.msk [vmem:[%s297 + $0x54] sm:$0xf] %vm2915, %v2904
        %2938 = vst.msk [vmem:[%s297 + $0x58] sm:$0xf] %vm2915, %v2905
        %2939 = vst.msk [vmem:[%s297 + $0x5c] sm:$0xf] %vm2915, %v2906
        %2940 = vst.msk [vmem:[%s297 + $0x60] sm:$0xf] %vm2915, %v2907
        %2941 = vst.msk [vmem:[%s297 + $0x64] sm:$0xf] %vm2915, %v2908
        %2942 = vst.msk [vmem:[%s297 + $0x68] sm:$0xf] %vm2915, %v2909
        %2943 = vst.msk [vmem:[%s297 + $0x6c] sm:$0xf] %vm2915, %v2910
        %2944 = vst.msk [vmem:[%s297 + $0x70] sm:$0xf] %vm2915, %v2911
        %2945 = vst.msk [vmem:[%s297 + $0x74] sm:$0xf] %vm2915, %v2912
        %2946 = vst.msk [vmem:[%s297 + $0x78] sm:$0xf] %vm2915, %v2913
        %2947 = vst.msk [vmem:[%s297 + $0x7c] sm:$0xf] %vm2915, %v2914
        %s2948 = sand.u32 %s164, 1
        %s2949 = scalar_lea.sflag [#allocation5], %s2948
        %s2950 = sand.u32 %s164, 1
        %s2951 = smul.addr %s2950, 128
        %s2952 = scalar_lea.vmem [#allocation4], %s2951
        // Predicated region
        $region41: #{tpu_custom_call.1} parent=39 // pred_check
          %p2953 = pneg %p174
        $region42: #{tpu_custom_call.1} parent=39 // pred_check_branch
          %2955 = sbr.rel (%p2953) target = $region44
        $region43: #{tpu_custom_call.1} parent=39 // pred_region
          %s2956 = smul.u32 16, %s24
          %2958 = vsyncadd %s2949, 0
          %s2959 = smul.addr %s2956, 2
          %s2960 = smul.addr %s23, 32
          %s2961 = sadd.s32 %s2959, %s2960
          %s2962 = smul.addr %s2961, 4
          %s2963 = scalar_lea.hbm %s5, %s2962
          %s2964 = sshll.u32 %s2952, 4
          %s2965 = int_to_ptr.vmem [resolvable:$true] %s2964
          %s2966 = sshll.u32 %s2963, 4
          %s2967 = int_to_ptr.hbm [resolvable:$true] %s2966
          %2972 = dma.vmem_to_hbm [thread:$0]  %s2965, 2048, %s2967, %s2949, 64, 64, 4
        $region44: #{tpu_custom_call.1} parent=39 // pred_fallthru
          _
      $region40: #{tpu_custom_call.1} parent=5 // pred_fallthru
        _
      %p2973 = scmp.le.s32.totalorder 2, %s14
      // Predicated region
      $region45: #{tpu_custom_call.1} parent=5 // pred_check
        %p2974 = pneg %p2973
      $region46: #{tpu_custom_call.1} parent=5 // pred_check_branch
        %2976 = sbr.rel (%p2974) target = $region48
      $region47: #{tpu_custom_call.1} parent=5 // pred_region
        %s2977 = ssub.s32 %s14, 2
        // Predicated region
        $region49: #{tpu_custom_call.1} parent=47 // pred_check
          %p2978 = pneg %p180
        $region50: #{tpu_custom_call.1} parent=47 // pred_check_branch
          %2980 = sbr.rel (%p2978) target = $region52
        $region51: #{tpu_custom_call.1} parent=47 // pred_region
          %s2981 = sand.u32 %s165, 1
          %s2982 = scalar_lea.sflag [#allocation5], %s2981
          %s2983 = sand.u32 %s165, 1
          %s2984 = smul.addr %s2983, 128
          %s2985 = scalar_lea.vmem [#allocation4], %s2984
          %2987 = dma.done %s2982, 2048
        $region52: #{tpu_custom_call.1} parent=47 // pred_fallthru
          _
      $region48: #{tpu_custom_call.1} parent=5 // pred_fallthru
        _
    $region6: #{tpu_custom_call.1} parent=1 // loop_footer
      %s18 = sadd.s32 1, %s14
    $region7: #{tpu_custom_call.1} parent=1 // loop_footer_branch
      %13 = sbr.rel target = $region3
    $region8: #{tpu_custom_call.1} parent=1 // loop_exit
      _
    %2988 = vsyncpa [#allocation5], 1
    %s2989 = scalar_lea.sflag [#allocation5], 1
    %2990 = vsyncpa %s2989, 1

</llo_original>
